<compile_context>
chip_gen: v5e
topology: v5e:2x2
jax: 0.10.0
libtpu: 0.0.40
codegen_flags: <defaults>
</compile_context>

<pallas_src>
import math
import jax
import jax.numpy as jnp
from jax import lax
from jax.experimental import pallas as pl
from jax.experimental.pallas import tpu as pltpu

# ---------------- config (small, consistent with the module) ----------------
B = 2          # batch
S = 8          # seq_len
IN_DIM = 16    # input_dim
HID = 32       # hidden_dim (d_model)
OUT_DIM = 8    # output_dim
NHEAD = 8
HEAD_DIM = HID // NHEAD
NLAYERS = 2
FF = 4 * HID   # dim_feedforward = 128
MAX_LEN = 24
EPS = 1e-5
LANES = 128

BS = B * S                       # 16: whole batch folded onto sublanes
NKV = NHEAD * BS                 # 128: expanded K/V rows (head-major, batch, key)

# all segment sizes are powers of two -> masks use shifts / ands only
LS = S.bit_length() - 1          # 3
LBS = BS.bit_length() - 1        # 4
LHD = HEAD_DIM.bit_length() - 1  # 2

# ---- misc pack (MISC_ROWS x 128) row offsets --------------------------------
R_WIN = 0                        # w_in          rows [0,16), lanes 0:HID
R_PE = R_WIN + IN_DIM            # pe tiled by B rows [16,32), lanes 0:HID
R_WOUT = R_PE + BS               # w_out         rows [32,64), lanes 0:OUT_DIM
R_VEC = R_WOUT + HID             # b_in | norm_g | norm_b in one row's lanes
R_BOUT = R_VEC + 1               # b_out (lanes 0:OUT_DIM)
MISC_ROWS = 72                   # padded to a multiple of 8

# ---- per-layer pack (NLAYERS x LWB_ROWS x 128) row offsets ------------------
RW_QKVO = 0                      # rows 0:32  lanes 0:96 qkv_w (Q pre-scaled) | 96:128 ow
RW_F1 = HID                      # rows 32:64 f1w (32,128)
RB = 2 * HID                     # rows 64:72 bias / LN rows:
#   RB+0 qkv_b  RB+1 f1b  RB+2 ob  RB+3 ln1g  RB+4 ln1b  RB+5 ln2g  RB+6 ln2b  RB+7 f2b
LWB_ROWS = RB + 8                # 72


# ---------------- glue: standard sinusoidal positional encoding -------------
def make_positional_encoding(d_model, max_len):
    position = jnp.arange(max_len, dtype=jnp.float32)[:, None]
    div_term = jnp.exp(
        jnp.arange(0, d_model, 2, dtype=jnp.float32) * (-math.log(10000.0) / d_model)
    )
    pe = jnp.zeros((max_len, d_model), jnp.float32)
    pe = pe.at[:, 0::2].set(jnp.sin(position * div_term))
    pe = pe.at[:, 1::2].set(jnp.cos(position * div_term))
    return pe


# ---------------- small in-kernel helpers ------------------------------------
def _layer_norm(x, g, b):
    mu = jnp.mean(x, axis=-1, keepdims=True)
    var = jnp.mean((x - mu) ** 2, axis=-1, keepdims=True)
    return (x - mu) * lax.rsqrt(var + EPS) * g + b


def _iota(shape, dim):
    return lax.broadcasted_iota(jnp.int32, shape, dim)


def _mask(cond, one=1.0):
    return jnp.where(cond, jnp.float32(one), jnp.float32(0.0))


# ---------------- Pallas kernel ----------------------------------------------
def temporal_transformer_kernel(x_ref, wio_ref, lwb_ref, f2w_ref, out_ref):
    # ---- constant 0/1 matrices, built ONCE (iota + shift/and compares) ------
    # expand_mat: (NKV, BS) one-hot; expanded row c = h*BS + b*S + j picks
    # source row (c mod BS) = b*S + j.
    expand_mat = _mask(
        jnp.bitwise_and(_iota((NKV, BS), 0), BS - 1) == _iota((NKV, BS), 1))
    # kv_mask: (NKV, 2*HID); keep lane m of expanded row c iff m's head == c's head.
    kv_mask = _mask(
        jnp.right_shift(jnp.bitwise_and(_iota((NKV, 2 * HID), 1), HID - 1), LHD)
        == jnp.right_shift(_iota((NKV, 2 * HID), 0), LBS))
    # valid_mask: (BS, NKV); score column c is valid for query row r iff same batch.
    valid_mask = _mask(
        jnp.bitwise_and(jnp.right_shift(_iota((BS, NKV), 1), LS), B - 1)
        == jnp.right_shift(_iota((BS, NKV), 0), LS))
    # seg_ones: (NKV, NKV) block-diag ones; segments of S lanes = one (head,batch) softmax.
    seg_ones = _mask(
        jnp.right_shift(_iota((NKV, NKV), 0), LS)
        == jnp.right_shift(_iota((NKV, NKV), 1), LS))
    # pool_mat: (B, BS) block row-averaging matrix (mean over the sequence).
    pool_mat = _mask(
        jnp.right_shift(_iota((B, BS), 1), LS) == _iota((B, BS), 0), 1.0 / S)

    # ---- unpack the misc tensor (static slices) ------------------------------
    w_in = wio_ref[R_WIN:R_WIN + IN_DIM, 0:HID]            # (16, 32)
    pe = wio_ref[R_PE:R_PE + BS, 0:HID]                    # (16, 32)
    w_out = wio_ref[R_WOUT:R_WOUT + HID, :]                # (32, 128), lanes>=OUT_DIM zero
    b_in = wio_ref[R_VEC:R_VEC + 1, 0:HID]                 # (1, 32)
    norm_g = wio_ref[R_VEC:R_VEC + 1, HID:2 * HID]
    norm_b = wio_ref[R_VEC:R_VEC + 1, 2 * HID:3 * HID]
    b_out = wio_ref[R_BOUT:R_BOUT + 1, :]                  # (1, 128)

    # ---- input projection + positional encoding + pre-transformer LayerNorm --
    x = x_ref[...]                                         # (B*S, IN_DIM)
    h = jnp.dot(x, w_in, preferred_element_type=jnp.float32) + b_in + pe
    h = _layer_norm(h, norm_g, norm_b)                     # (16, 32)

    for l in range(NLAYERS):
        # ---- unpack per-layer weights / biases ----
        wqkvo = lwb_ref[l, RW_QKVO:RW_QKVO + HID, :]       # (32,128): qkv_w | ow
        ow = lwb_ref[l, RW_QKVO:RW_QKVO + HID, 3 * HID:4 * HID]   # (32, 32)
        f1w = lwb_ref[l, RW_F1:RW_F1 + HID, :]             # (32, 128)
        f2w = f2w_ref[l]                                   # (128, 32)
        qkv_b = lwb_ref[l, RB + 0:RB + 1, :]               # (1,128), lanes 96: zero
        f1b = lwb_ref[l, RB + 1:RB + 2, :]                 # (1,128)
        ob = lwb_ref[l, RB + 2:RB + 3, 0:HID]
        ln1g = lwb_ref[l, RB + 3:RB + 4, 0:HID]
        ln1b = lwb_ref[l, RB + 4:RB + 5, 0:HID]
        ln2g = lwb_ref[l, RB + 5:RB + 6, 0:HID]
        ln2b = lwb_ref[l, RB + 6:RB + 7, 0:HID]
        f2b = lwb_ref[l, RB + 7:RB + 8, 0:HID]

        # ---- fused QKV projection for the whole batch (lanes 96:128 of the
        # result are h@ow -- same MXU pass, never read) ----
        qkv = jnp.dot(h, wqkvo, preferred_element_type=jnp.float32) + qkv_b  # (16,128)
        q = qkv[:, 0:HID]                 # (16,32) Q, already scaled by 1/sqrt(HEAD_DIM)
        kv = qkv[:, HID:3 * HID]          # (16,64) [K | V]

        # ---- expand K/V to the block-diagonal layout: row c = h*16 + b*8 + j
        # carries (batch b, key j), with only head h's HEAD_DIM lanes kept ----
        kv_e = jnp.dot(expand_mat, kv, preferred_element_type=jnp.float32) * kv_mask
        k_e = kv_e[:, 0:HID]              # (128, 32)
        v_e = kv_e[:, HID:2 * HID]        # (128, 32)

        # ---- ALL (batch, head) scores in one matmul -> lane-dense (16,128) ----
        scores = lax.dot_general(q, k_e, (((1,), (1,)), ((), ())),
                                 preferred_element_type=jnp.float32)

        # ---- one lane-dense softmax over every 8-lane segment.
        # Subtracting the full-row max is exact (per-row constant cancels in
        # each segment's softmax); cross-batch "garbage" columns are finite and
        # masked out after normalization.
        p = jnp.exp(scores - jnp.max(scores, axis=-1, keepdims=True))        # (16,128)
        denom = jnp.dot(p, seg_ones, preferred_element_type=jnp.float32)     # segment sums
        p = p * valid_mask / denom        # exact divide; zero cross-batch columns

        # ---- PV + head re-assembly in one matmul, then out_proj --------------
        o_cat = jnp.dot(p, v_e, preferred_element_type=jnp.float32)          # (16, 32)
        sa = jnp.dot(o_cat, ow, preferred_element_type=jnp.float32) + ob     # (16, 32)

        # ---- post-norm residual block 1 ----
        h = _layer_norm(h + sa, ln1g, ln1b)

        # ---- feed-forward (relu), whole batch at once ----
        ff = jnp.dot(h, f1w, preferred_element_type=jnp.float32) + f1b       # (16,128)
        ff = jnp.maximum(ff, 0.0)
        ff = jnp.dot(ff, f2w, preferred_element_type=jnp.float32) + f2b      # (16, 32)

        # ---- post-norm residual block 2 ----
        h = _layer_norm(h + ff, ln2g, ln2b)

    # ---- mean over sequence via one matmul, then lane-dense output store ----
    pooled = jnp.dot(pool_mat, h, preferred_element_type=jnp.float32)        # (B, 32)
    out_ref[...] = (jnp.dot(pooled, w_out, preferred_element_type=jnp.float32)
                    + b_out)                                                 # (B, 128)


# ---------------- parameter packing (wrapper-side, one-time) -----------------
def pack_params(p, pe):
    scale = 1.0 / math.sqrt(HEAD_DIM)
    # per-output-column scale: Q columns absorb 1/sqrt(HEAD_DIM), K/V unchanged
    qcol = jnp.concatenate([jnp.full((HID,), scale, jnp.float32),
                            jnp.ones((2 * HID,), jnp.float32)])

    wio = jnp.zeros((MISC_ROWS, LANES), jnp.float32)
    wio = wio.at[R_WIN:R_WIN + IN_DIM, 0:HID].set(p["w_in"])
    wio = wio.at[R_PE:R_PE + BS, 0:HID].set(jnp.tile(pe, (B, 1)))
    wio = wio.at[R_WOUT:R_WOUT + HID, 0:OUT_DIM].set(p["w_out"])
    wio = wio.at[R_VEC, 0:HID].set(p["b_in"][0])
    wio = wio.at[R_VEC, HID:2 * HID].set(p["norm_g"][0])
    wio = wio.at[R_VEC, 2 * HID:3 * HID].set(p["norm_b"][0])
    wio = wio.at[R_BOUT, 0:OUT_DIM].set(p["b_out"][0])

    lwb = jnp.zeros((NLAYERS, LWB_ROWS, LANES), jnp.float32)
    for l in range(NLAYERS):
        lwb = lwb.at[l, RW_QKVO:RW_QKVO + HID, 0:3 * HID].set(p["qkv_w"][l] * qcol[None, :])
        lwb = lwb.at[l, RW_QKVO:RW_QKVO + HID, 3 * HID:4 * HID].set(p["ow"][l])
        lwb = lwb.at[l, RW_F1:RW_F1 + HID, 0:FF].set(p["f1w"][l])
        lwb = lwb.at[l, RB + 0, 0:3 * HID].set(p["qkv_b"][l][0] * qcol)
        lwb = lwb.at[l, RB + 1, 0:FF].set(p["f1b"][l][0])
        lwb = lwb.at[l, RB + 2, 0:HID].set(p["ob"][l][0])
        lwb = lwb.at[l, RB + 3, 0:HID].set(p["ln1g"][l][0])
        lwb = lwb.at[l, RB + 4, 0:HID].set(p["ln1b"][l][0])
        lwb = lwb.at[l, RB + 5, 0:HID].set(p["ln2g"][l][0])
        lwb = lwb.at[l, RB + 6, 0:HID].set(p["ln2b"][l][0])
        lwb = lwb.at[l, RB + 7, 0:HID].set(p["f2b"][l][0])

    f2w = p["f2w"]                                 # natural shape (NLAYERS, FF, HID)
    return wio, lwb, f2w


# ---------------- wrapper -----------------------------------------------------
def temporal_transformer(x, pe, params):
    x2d = x.reshape(BS, IN_DIM)
    wio, lwb, f2w = pack_params(params, pe)

    out = pl.pallas_call(
        temporal_transformer_kernel,
        out_shape=jax.ShapeDtypeStruct((B, LANES), jnp.float32),
        grid=(1,),
        in_specs=[
            pl.BlockSpec((BS, IN_DIM), lambda i: (0, 0)),                 # x
            pl.BlockSpec((MISC_ROWS, LANES), lambda i: (0, 0)),           # misc pack
            pl.BlockSpec((NLAYERS, LWB_ROWS, LANES), lambda i: (0, 0, 0)),  # layer pack
            pl.BlockSpec((NLAYERS, FF, HID), lambda i: (0, 0, 0)),        # f2w (no lane pad)
        ],
        out_specs=pl.BlockSpec((B, LANES), lambda i: (0, 0)),
        compiler_params=pltpu.CompilerParams(
            dimension_semantics=("arbitrary",)),
    )(x2d, wio, lwb, f2w)
    return out[:, :OUT_DIM]


# ---------------- deterministic parameter init (synthetic) ------------------
def init_params(key):
    ks = jax.random.split(key, 12)
    w = lambda k, shape, scale=0.1: jax.random.normal(k, shape, jnp.float32) * scale
    return {
        "w_in": w(ks[0], (IN_DIM, HID)),
        "b_in": w(ks[1], (1, HID), 0.01),
        "norm_g": jnp.ones((1, HID), jnp.float32),
        "norm_b": jnp.zeros((1, HID), jnp.float32),
        "qkv_w": w(ks[2], (NLAYERS, HID, 3 * HID)),
        "qkv_b": w(ks[3], (NLAYERS, 1, 3 * HID), 0.01),
        "ow": w(ks[4], (NLAYERS, HID, HID)),
        "ob": w(ks[5], (NLAYERS, 1, HID), 0.01),
        "ln1g": jnp.ones((NLAYERS, 1, HID), jnp.float32),
        "ln1b": jnp.zeros((NLAYERS, 1, HID), jnp.float32),
        "ln2g": jnp.ones((NLAYERS, 1, HID), jnp.float32),
        "ln2b": jnp.zeros((NLAYERS, 1, HID), jnp.float32),
        "f1w": w(ks[6], (NLAYERS, HID, FF)),
        "f1b": w(ks[7], (NLAYERS, 1, FF), 0.01),
        "f2w": w(ks[8], (NLAYERS, FF, HID)),
        "f2b": w(ks[9], (NLAYERS, 1, HID), 0.01),
        "w_out": w(ks[10], (HID, OUT_DIM)),
        "b_out": w(ks[11], (1, OUT_DIM), 0.01),
    }


# ---------------- pure-JAX reference (for correctness check) ----------------
def ref_forward(x, pe, p):
    def ln(z, g, b):
        mu = jnp.mean(z, axis=-1, keepdims=True)
        var = jnp.mean((z - mu) ** 2, axis=-1, keepdims=True)
        return (z - mu) * lax.rsqrt(var + EPS) * g + b

    h = x @ p["w_in"] + p["b_in"]
    h = h + pe[None]
    h = ln(h, p["norm_g"], p["norm_b"])
    for l in range(NLAYERS):
        qkv = h @ p["qkv_w"][l] + p["qkv_b"][l]
        q, k, v = qkv[..., :HID], qkv[..., HID:2 * HID], qkv[..., 2 * HID:]
        q = q.reshape(B, S, NHEAD, HEAD_DIM).transpose(0, 2, 1, 3)
        k = k.reshape(B, S, NHEAD, HEAD_DIM).transpose(0, 2, 1, 3)
        v = v.reshape(B, S, NHEAD, HEAD_DIM).transpose(0, 2, 1, 3)
        sc = jnp.einsum("bhqd,bhkd->bhqk", q, k) / math.sqrt(HEAD_DIM)
        attn = jax.nn.softmax(sc, axis=-1)
        o = jnp.einsum("bhqk,bhkd->bhqd", attn, v).transpose(0, 2, 1, 3).reshape(B, S, HID)
        sa = o @ p["ow"][l] + p["ob"][l]
        h = ln(h + sa, p["ln1g"][l], p["ln1b"][l])
        ff = jnp.maximum(h @ p["f1w"][l] + p["f1b"][l], 0.0)
        ff = ff @ p["f2w"][l] + p["f2b"][l]
        h = ln(h + ff, p["ln2g"][l], p["ln2b"][l])
    pooled = jnp.mean(h, axis=1)
    return pooled @ p["w_out"] + p["b_out"]


if __name__ == "__main__":
    key = jax.random.PRNGKey(0)
    kx, kp = jax.random.split(key)
    x = jax.random.normal(kx, (B, S, IN_DIM), jnp.float32)
    params = init_params(kp)
    pe = make_positional_encoding(HID, MAX_LEN)[:S]

    out = temporal_transformer(x, pe, params)
    out = jax.block_until_ready(out)
    assert out.shape == (B, OUT_DIM)

    # exact softmax divide in the kernel -> tight tolerance restored
    with jax.default_matmul_precision("highest"):
        ref = ref_forward(x, pe, params)
    assert jnp.allclose(out, ref, atol=1e-4, rtol=1e-4), (out, ref)
    print("KERNEL_OK")
</pallas_src>

<mosaic_0001>
module attributes {stable_mosaic.version = 11 : i64} {
  func.func @temporal_transformer_kernel(%arg0: i32, %arg1: memref<16x16xf32, #tpu.memory_space<vmem>>, %arg2: memref<72x128xf32, #tpu.memory_space<vmem>>, %arg3: memref<2x72x128xf32, #tpu.memory_space<vmem>>, %arg4: memref<2x128x32xf32, #tpu.memory_space<vmem>>, %arg5: memref<2x128xf32, #tpu.memory_space<vmem>>) attributes {dimension_semantics = [#tpu.dimension_semantics<arbitrary>], iteration_bounds = array<i64: 1>, scalar_prefetch = 0 : i64, scratch_operands = 0 : i64, tpu.core_type = #tpu.core_type<tc>, window_params = [{pipeline_mode = #tpu.pipeline_mode<synchronous>, transform_indices = @transform_0, window_bounds = array<i64: 16, 16>}, {pipeline_mode = #tpu.pipeline_mode<synchronous>, transform_indices = @transform_1, window_bounds = array<i64: 72, 128>}, {pipeline_mode = #tpu.pipeline_mode<synchronous>, transform_indices = @transform_2, window_bounds = array<i64: 2, 72, 128>}, {pipeline_mode = #tpu.pipeline_mode<synchronous>, transform_indices = @transform_3, window_bounds = array<i64: 2, 128, 32>}, {pipeline_mode = #tpu.pipeline_mode<synchronous>, transform_indices = @transform_4, window_bounds = array<i64: 2, 128>}]} {
    %0 = tpu.iota {dimensions = array<i32: 0>} : vector<128x16xi32>
    %c15_i32 = arith.constant 15 : i32
    %1 = vector.broadcast %c15_i32 : i32 to vector<128x16xi32>
    %2 = arith.andi %0, %1 : vector<128x16xi32>
    %3 = tpu.iota {dimensions = array<i32: 1>} : vector<128x16xi32>
    %4 = arith.cmpi eq, %2, %3 : vector<128x16xi32>
    %cst = arith.constant 1.000000e+00 : f32
    %cst_0 = arith.constant 0.000000e+00 : f32
    %5 = vector.broadcast %cst : f32 to vector<128x16xf32>
    %6 = vector.broadcast %cst_0 : f32 to vector<128x16xf32>
    %7 = arith.select %4, %5, %6 : vector<128x16xi1>, vector<128x16xf32>
    %8 = tpu.iota {dimensions = array<i32: 1>} : vector<128x64xi32>
    %c31_i32 = arith.constant 31 : i32
    %9 = vector.broadcast %c31_i32 : i32 to vector<128x64xi32>
    %10 = arith.andi %8, %9 : vector<128x64xi32>
    %c2_i32 = arith.constant 2 : i32
    %11 = vector.broadcast %c2_i32 : i32 to vector<128x64xi32>
    %12 = arith.shrsi %10, %11 : vector<128x64xi32>
    %13 = tpu.iota {dimensions = array<i32: 0>} : vector<128x64xi32>
    %c4_i32 = arith.constant 4 : i32
    %14 = vector.broadcast %c4_i32 : i32 to vector<128x64xi32>
    %15 = arith.shrsi %13, %14 : vector<128x64xi32>
    %16 = arith.cmpi eq, %12, %15 : vector<128x64xi32>
    %cst_1 = arith.constant 1.000000e+00 : f32
    %cst_2 = arith.constant 0.000000e+00 : f32
    %17 = vector.broadcast %cst_1 : f32 to vector<128x64xf32>
    %18 = vector.broadcast %cst_2 : f32 to vector<128x64xf32>
    %19 = arith.select %16, %17, %18 : vector<128x64xi1>, vector<128x64xf32>
    %20 = tpu.iota {dimensions = array<i32: 1>} : vector<16x128xi32>
    %c3_i32 = arith.constant 3 : i32
    %21 = vector.broadcast %c3_i32 : i32 to vector<16x128xi32>
    %22 = arith.shrsi %20, %21 : vector<16x128xi32>
    %c1_i32 = arith.constant 1 : i32
    %23 = vector.broadcast %c1_i32 : i32 to vector<16x128xi32>
    %24 = arith.andi %22, %23 : vector<16x128xi32>
    %25 = tpu.iota {dimensions = array<i32: 0>} : vector<16x128xi32>
    %c3_i32_3 = arith.constant 3 : i32
    %26 = vector.broadcast %c3_i32_3 : i32 to vector<16x128xi32>
    %27 = arith.shrsi %25, %26 : vector<16x128xi32>
    %28 = arith.cmpi eq, %24, %27 : vector<16x128xi32>
    %cst_4 = arith.constant 1.000000e+00 : f32
    %cst_5 = arith.constant 0.000000e+00 : f32
    %29 = vector.broadcast %cst_4 : f32 to vector<16x128xf32>
    %30 = vector.broadcast %cst_5 : f32 to vector<16x128xf32>
    %31 = arith.select %28, %29, %30 : vector<16x128xi1>, vector<16x128xf32>
    %32 = tpu.iota {dimensions = array<i32: 0>} : vector<128x128xi32>
    %c3_i32_6 = arith.constant 3 : i32
    %33 = vector.broadcast %c3_i32_6 : i32 to vector<128x128xi32>
    %34 = arith.shrsi %32, %33 : vector<128x128xi32>
    %35 = tpu.iota {dimensions = array<i32: 1>} : vector<128x128xi32>
    %c3_i32_7 = arith.constant 3 : i32
    %36 = vector.broadcast %c3_i32_7 : i32 to vector<128x128xi32>
    %37 = arith.shrsi %35, %36 : vector<128x128xi32>
    %38 = arith.cmpi eq, %34, %37 : vector<128x128xi32>
    %cst_8 = arith.constant 1.000000e+00 : f32
    %cst_9 = arith.constant 0.000000e+00 : f32
    %39 = vector.broadcast %cst_8 : f32 to vector<128x128xf32>
    %40 = vector.broadcast %cst_9 : f32 to vector<128x128xf32>
    %41 = arith.select %38, %39, %40 : vector<128x128xi1>, vector<128x128xf32>
    %42 = tpu.iota {dimensions = array<i32: 1>} : vector<2x16xi32>
    %c3_i32_10 = arith.constant 3 : i32
    %43 = vector.broadcast %c3_i32_10 : i32 to vector<2x16xi32>
    %44 = arith.shrsi %42, %43 : vector<2x16xi32>
    %45 = tpu.iota {dimensions = array<i32: 0>} : vector<2x16xi32>
    %46 = arith.cmpi eq, %44, %45 : vector<2x16xi32>
    %cst_11 = arith.constant 1.250000e-01 : f32
    %cst_12 = arith.constant 0.000000e+00 : f32
    %47 = vector.broadcast %cst_11 : f32 to vector<2x16xf32>
    %48 = vector.broadcast %cst_12 : f32 to vector<2x16xf32>
    %49 = arith.select %46, %47, %48 : vector<2x16xi1>, vector<2x16xf32>
    %c0 = arith.constant 0 : index
    %c0_13 = arith.constant 0 : index
    %50 = vector.load %arg2[%c0, %c0_13] : memref<72x128xf32, #tpu.memory_space<vmem>>, vector<16x32xf32>
    %c16 = arith.constant 16 : index
    %c0_14 = arith.constant 0 : index
    %51 = vector.load %arg2[%c16, %c0_14] : memref<72x128xf32, #tpu.memory_space<vmem>>, vector<16x32xf32>
    %c32 = arith.constant 32 : index
    %c0_15 = arith.constant 0 : index
    %52 = vector.load %arg2[%c32, %c0_15] : memref<72x128xf32, #tpu.memory_space<vmem>>, vector<32x128xf32>
    %c64 = arith.constant 64 : index
    %c0_16 = arith.constant 0 : index
    %53 = vector.load %arg2[%c64, %c0_16] : memref<72x128xf32, #tpu.memory_space<vmem>>, vector<1x32xf32>
    %c64_17 = arith.constant 64 : index
    %c32_18 = arith.constant 32 : index
    %54 = vector.load %arg2[%c64_17, %c32_18] : memref<72x128xf32, #tpu.memory_space<vmem>>, vector<1x32xf32>
    %c64_19 = arith.constant 64 : index
    %c64_20 = arith.constant 64 : index
    %55 = vector.load %arg2[%c64_19, %c64_20] : memref<72x128xf32, #tpu.memory_space<vmem>>, vector<1x32xf32>
    %c65 = arith.constant 65 : index
    %c0_21 = arith.constant 0 : index
    %56 = vector.load %arg2[%c65, %c0_21] : memref<72x128xf32, #tpu.memory_space<vmem>>, vector<1x128xf32>
    %c0_22 = arith.constant 0 : index
    %c0_23 = arith.constant 0 : index
    %57 = vector.load %arg1[%c0_22, %c0_23] : memref<16x16xf32, #tpu.memory_space<vmem>>, vector<16x16xf32>
    %cst_24 = arith.constant dense<0.000000e+00> : vector<16x32xf32>
    %58 = tpu.matmul %57, %50, %cst_24 {dimension_numbers = #tpu.dot_dimension_numbers<[1], [0], [0], [1], [0, 0, 1, 1], [], []>} : vector<16x16xf32>, vector<16x32xf32>, vector<16x32xf32> -> vector<16x32xf32>
    %59 = vector.broadcast %53 : vector<1x32xf32> to vector<16x32xf32>
    %60 = arith.addf %58, %59 : vector<16x32xf32>
    %61 = arith.addf %60, %51 : vector<16x32xf32>
    %cst_25 = arith.constant dense<0.000000e+00> : vector<16xf32>
    %62 = vector.multi_reduction <add>, %61, %cst_25 [1] : vector<16x32xf32> to vector<16xf32>
    %63 = vector.shape_cast %62 : vector<16xf32> to vector<16x1xf32>
    %cst_26 = arith.constant 3.200000e+01 : f32
    %64 = vector.broadcast %cst_26 : f32 to vector<16x1xf32>
    %65 = arith.divf %63, %64 : vector<16x1xf32>
    %66 = vector.broadcast %65 : vector<16x1xf32> to vector<16x32xf32>
    %67 = arith.subf %61, %66 : vector<16x32xf32>
    %68 = arith.mulf %67, %67 : vector<16x32xf32>
    %cst_27 = arith.constant dense<0.000000e+00> : vector<16xf32>
    %69 = vector.multi_reduction <add>, %68, %cst_27 [1] : vector<16x32xf32> to vector<16xf32>
    %70 = vector.shape_cast %69 : vector<16xf32> to vector<16x1xf32>
    %cst_28 = arith.constant 3.200000e+01 : f32
    %71 = vector.broadcast %cst_28 : f32 to vector<16x1xf32>
    %72 = arith.divf %70, %71 : vector<16x1xf32>
    %73 = vector.broadcast %65 : vector<16x1xf32> to vector<16x32xf32>
    %74 = arith.subf %61, %73 : vector<16x32xf32>
    %cst_29 = arith.constant 9.99999974E-6 : f32
    %75 = vector.broadcast %cst_29 : f32 to vector<16x1xf32>
    %76 = arith.addf %72, %75 : vector<16x1xf32>
    %77 = math.rsqrt %76 : vector<16x1xf32>
    %78 = vector.broadcast %77 : vector<16x1xf32> to vector<16x32xf32>
    %79 = arith.mulf %74, %78 : vector<16x32xf32>
    %80 = vector.broadcast %54 : vector<1x32xf32> to vector<16x32xf32>
    %81 = arith.mulf %79, %80 : vector<16x32xf32>
    %82 = vector.broadcast %55 : vector<1x32xf32> to vector<16x32xf32>
    %83 = arith.addf %81, %82 : vector<16x32xf32>
    %c0_30 = arith.constant 0 : index
    %c0_31 = arith.constant 0 : index
    %c0_32 = arith.constant 0 : index
    %84 = vector.load %arg3[%c0_30, %c0_31, %c0_32] : memref<2x72x128xf32, #tpu.memory_space<vmem>>, vector<1x32x128xf32>
    %85 = vector.shape_cast %84 : vector<1x32x128xf32> to vector<32x128xf32>
    %c0_33 = arith.constant 0 : index
    %c0_34 = arith.constant 0 : index
    %c96 = arith.constant 96 : index
    %86 = vector.load %arg3[%c0_33, %c0_34, %c96] : memref<2x72x128xf32, #tpu.memory_space<vmem>>, vector<1x32x32xf32>
    %87 = vector.shape_cast %86 : vector<1x32x32xf32> to vector<32x32xf32>
    %c0_35 = arith.constant 0 : index
    %c32_36 = arith.constant 32 : index
    %c0_37 = arith.constant 0 : index
    %88 = vector.load %arg3[%c0_35, %c32_36, %c0_37] : memref<2x72x128xf32, #tpu.memory_space<vmem>>, vector<1x32x128xf32>
    %89 = vector.shape_cast %88 : vector<1x32x128xf32> to vector<32x128xf32>
    %c0_38 = arith.constant 0 : index
    %c0_39 = arith.constant 0 : index
    %c0_40 = arith.constant 0 : index
    %90 = vector.load %arg4[%c0_38, %c0_39, %c0_40] : memref<2x128x32xf32, #tpu.memory_space<vmem>>, vector<1x128x32xf32>
    %91 = vector.shape_cast %90 : vector<1x128x32xf32> to vector<128x32xf32>
    %c0_41 = arith.constant 0 : index
    %c64_42 = arith.constant 64 : index
    %c0_43 = arith.constant 0 : index
    %92 = vector.load %arg3[%c0_41, %c64_42, %c0_43] : memref<2x72x128xf32, #tpu.memory_space<vmem>>, vector<1x1x128xf32>
    %93 = vector.shape_cast %92 : vector<1x1x128xf32> to vector<1x128xf32>
    %c0_44 = arith.constant 0 : index
    %c65_45 = arith.constant 65 : index
    %c0_46 = arith.constant 0 : index
    %94 = vector.load %arg3[%c0_44, %c65_45, %c0_46] : memref<2x72x128xf32, #tpu.memory_space<vmem>>, vector<1x1x128xf32>
    %95 = vector.shape_cast %94 : vector<1x1x128xf32> to vector<1x128xf32>
    %c0_47 = arith.constant 0 : index
    %c66 = arith.constant 66 : index
    %c0_48 = arith.constant 0 : index
    %96 = vector.load %arg3[%c0_47, %c66, %c0_48] : memref<2x72x128xf32, #tpu.memory_space<vmem>>, vector<1x1x32xf32>
    %97 = vector.shape_cast %96 : vector<1x1x32xf32> to vector<1x32xf32>
    %c0_49 = arith.constant 0 : index
    %c67 = arith.constant 67 : index
    %c0_50 = arith.constant 0 : index
    %98 = vector.load %arg3[%c0_49, %c67, %c0_50] : memref<2x72x128xf32, #tpu.memory_space<vmem>>, vector<1x1x32xf32>
    %99 = vector.shape_cast %98 : vector<1x1x32xf32> to vector<1x32xf32>
    %c0_51 = arith.constant 0 : index
    %c68 = arith.constant 68 : index
    %c0_52 = arith.constant 0 : index
    %100 = vector.load %arg3[%c0_51, %c68, %c0_52] : memref<2x72x128xf32, #tpu.memory_space<vmem>>, vector<1x1x32xf32>
    %101 = vector.shape_cast %100 : vector<1x1x32xf32> to vector<1x32xf32>
    %c0_53 = arith.constant 0 : index
    %c69 = arith.constant 69 : index
    %c0_54 = arith.constant 0 : index
    %102 = vector.load %arg3[%c0_53, %c69, %c0_54] : memref<2x72x128xf32, #tpu.memory_space<vmem>>, vector<1x1x32xf32>
    %103 = vector.shape_cast %102 : vector<1x1x32xf32> to vector<1x32xf32>
    %c0_55 = arith.constant 0 : index
    %c70 = arith.constant 70 : index
    %c0_56 = arith.constant 0 : index
    %104 = vector.load %arg3[%c0_55, %c70, %c0_56] : memref<2x72x128xf32, #tpu.memory_space<vmem>>, vector<1x1x32xf32>
    %105 = vector.shape_cast %104 : vector<1x1x32xf32> to vector<1x32xf32>
    %c0_57 = arith.constant 0 : index
    %c71 = arith.constant 71 : index
    %c0_58 = arith.constant 0 : index
    %106 = vector.load %arg3[%c0_57, %c71, %c0_58] : memref<2x72x128xf32, #tpu.memory_space<vmem>>, vector<1x1x32xf32>
    %107 = vector.shape_cast %106 : vector<1x1x32xf32> to vector<1x32xf32>
    %cst_59 = arith.constant dense<0.000000e+00> : vector<16x128xf32>
    %108 = tpu.matmul %83, %85, %cst_59 {dimension_numbers = #tpu.dot_dimension_numbers<[1], [0], [0], [1], [0, 0, 1, 1], [], []>} : vector<16x32xf32>, vector<32x128xf32>, vector<16x128xf32> -> vector<16x128xf32>
    %109 = vector.broadcast %93 : vector<1x128xf32> to vector<16x128xf32>
    %110 = arith.addf %108, %109 : vector<16x128xf32>
    %111 = vector.extract_strided_slice %110 {offsets = [0, 0], sizes = [16, 32], strides = [1, 1]} : vector<16x128xf32> to vector<16x32xf32>
    %112 = vector.extract_strided_slice %110 {offsets = [0, 32], sizes = [16, 64], strides = [1, 1]} : vector<16x128xf32> to vector<16x64xf32>
    %cst_60 = arith.constant dense<0.000000e+00> : vector<128x64xf32>
    %113 = tpu.matmul %7, %112, %cst_60 {dimension_numbers = #tpu.dot_dimension_numbers<[1], [0], [0], [1], [0, 0, 1, 1], [], []>} : vector<128x16xf32>, vector<16x64xf32>, vector<128x64xf32> -> vector<128x64xf32>
    %114 = arith.mulf %113, %19 : vector<128x64xf32>
    %115 = vector.extract_strided_slice %114 {offsets = [0, 0], sizes = [128, 32], strides = [1, 1]} : vector<128x64xf32> to vector<128x32xf32>
    %116 = vector.extract_strided_slice %114 {offsets = [0, 32], sizes = [128, 32], strides = [1, 1]} : vector<128x64xf32> to vector<128x32xf32>
    %cst_61 = arith.constant dense<0.000000e+00> : vector<16x128xf32>
    %117 = tpu.matmul %111, %115, %cst_61 {dimension_numbers = #tpu.dot_dimension_numbers<[1], [1], [0], [0], [0, 0, 1, 0], [], []>} : vector<16x32xf32>, vector<128x32xf32>, vector<16x128xf32> -> vector<16x128xf32>
    %cst_62 = arith.constant dense<0xFF800000> : vector<16xf32>
    %118 = vector.multi_reduction <maximumf>, %117, %cst_62 [1] : vector<16x128xf32> to vector<16xf32>
    %119 = vector.shape_cast %118 : vector<16xf32> to vector<16x1xf32>
    %120 = vector.broadcast %119 : vector<16x1xf32> to vector<16x128xf32>
    %121 = arith.subf %117, %120 : vector<16x128xf32>
    %122 = math.exp %121 : vector<16x128xf32>
    %cst_63 = arith.constant dense<0.000000e+00> : vector<16x128xf32>
    %123 = tpu.matmul %122, %41, %cst_63 {dimension_numbers = #tpu.dot_dimension_numbers<[1], [0], [0], [1], [0, 0, 1, 1], [], []>} : vector<16x128xf32>, vector<128x128xf32>, vector<16x128xf32> -> vector<16x128xf32>
    %124 = arith.mulf %122, %31 : vector<16x128xf32>
    %125 = arith.divf %124, %123 : vector<16x128xf32>
    %cst_64 = arith.constant dense<0.000000e+00> : vector<16x32xf32>
    %126 = tpu.matmul %125, %116, %cst_64 {dimension_numbers = #tpu.dot_dimension_numbers<[1], [0], [0], [1], [0, 0, 1, 1], [], []>} : vector<16x128xf32>, vector<128x32xf32>, vector<16x32xf32> -> vector<16x32xf32>
    %cst_65 = arith.constant dense<0.000000e+00> : vector<16x32xf32>
    %127 = tpu.matmul %126, %87, %cst_65 {dimension_numbers = #tpu.dot_dimension_numbers<[1], [0], [0], [1], [0, 0, 1, 1], [], []>} : vector<16x32xf32>, vector<32x32xf32>, vector<16x32xf32> -> vector<16x32xf32>
    %128 = vector.broadcast %97 : vector<1x32xf32> to vector<16x32xf32>
    %129 = arith.addf %127, %128 : vector<16x32xf32>
    %130 = arith.addf %83, %129 : vector<16x32xf32>
    %cst_66 = arith.constant dense<0.000000e+00> : vector<16xf32>
    %131 = vector.multi_reduction <add>, %130, %cst_66 [1] : vector<16x32xf32> to vector<16xf32>
    %132 = vector.shape_cast %131 : vector<16xf32> to vector<16x1xf32>
    %cst_67 = arith.constant 3.200000e+01 : f32
    %133 = vector.broadcast %cst_67 : f32 to vector<16x1xf32>
    %134 = arith.divf %132, %133 : vector<16x1xf32>
    %135 = vector.broadcast %134 : vector<16x1xf32> to vector<16x32xf32>
    %136 = arith.subf %130, %135 : vector<16x32xf32>
    %137 = arith.mulf %136, %136 : vector<16x32xf32>
    %cst_68 = arith.constant dense<0.000000e+00> : vector<16xf32>
    %138 = vector.multi_reduction <add>, %137, %cst_68 [1] : vector<16x32xf32> to vector<16xf32>
    %139 = vector.shape_cast %138 : vector<16xf32> to vector<16x1xf32>
    %cst_69 = arith.constant 3.200000e+01 : f32
    %140 = vector.broadcast %cst_69 : f32 to vector<16x1xf32>
    %141 = arith.divf %139, %140 : vector<16x1xf32>
    %142 = vector.broadcast %134 : vector<16x1xf32> to vector<16x32xf32>
    %143 = arith.subf %130, %142 : vector<16x32xf32>
    %cst_70 = arith.constant 9.99999974E-6 : f32
    %144 = vector.broadcast %cst_70 : f32 to vector<16x1xf32>
    %145 = arith.addf %141, %144 : vector<16x1xf32>
    %146 = math.rsqrt %145 : vector<16x1xf32>
    %147 = vector.broadcast %146 : vector<16x1xf32> to vector<16x32xf32>
    %148 = arith.mulf %143, %147 : vector<16x32xf32>
    %149 = vector.broadcast %99 : vector<1x32xf32> to vector<16x32xf32>
    %150 = arith.mulf %148, %149 : vector<16x32xf32>
    %151 = vector.broadcast %101 : vector<1x32xf32> to vector<16x32xf32>
    %152 = arith.addf %150, %151 : vector<16x32xf32>
    %cst_71 = arith.constant dense<0.000000e+00> : vector<16x128xf32>
    %153 = tpu.matmul %152, %89, %cst_71 {dimension_numbers = #tpu.dot_dimension_numbers<[1], [0], [0], [1], [0, 0, 1, 1], [], []>} : vector<16x32xf32>, vector<32x128xf32>, vector<16x128xf32> -> vector<16x128xf32>
    %154 = vector.broadcast %95 : vector<1x128xf32> to vector<16x128xf32>
    %155 = arith.addf %153, %154 : vector<16x128xf32>
    %cst_72 = arith.constant 0.000000e+00 : f32
    %156 = vector.broadcast %cst_72 : f32 to vector<16x128xf32>
    %157 = arith.maximumf %155, %156 : vector<16x128xf32>
    %cst_73 = arith.constant dense<0.000000e+00> : vector<16x32xf32>
    %158 = tpu.matmul %157, %91, %cst_73 {dimension_numbers = #tpu.dot_dimension_numbers<[1], [0], [0], [1], [0, 0, 1, 1], [], []>} : vector<16x128xf32>, vector<128x32xf32>, vector<16x32xf32> -> vector<16x32xf32>
    %159 = vector.broadcast %107 : vector<1x32xf32> to vector<16x32xf32>
    %160 = arith.addf %158, %159 : vector<16x32xf32>
    %161 = arith.addf %152, %160 : vector<16x32xf32>
    %cst_74 = arith.constant dense<0.000000e+00> : vector<16xf32>
    %162 = vector.multi_reduction <add>, %161, %cst_74 [1] : vector<16x32xf32> to vector<16xf32>
    %163 = vector.shape_cast %162 : vector<16xf32> to vector<16x1xf32>
    %cst_75 = arith.constant 3.200000e+01 : f32
    %164 = vector.broadcast %cst_75 : f32 to vector<16x1xf32>
    %165 = arith.divf %163, %164 : vector<16x1xf32>
    %166 = vector.broadcast %165 : vector<16x1xf32> to vector<16x32xf32>
    %167 = arith.subf %161, %166 : vector<16x32xf32>
    %168 = arith.mulf %167, %167 : vector<16x32xf32>
    %cst_76 = arith.constant dense<0.000000e+00> : vector<16xf32>
    %169 = vector.multi_reduction <add>, %168, %cst_76 [1] : vector<16x32xf32> to vector<16xf32>
    %170 = vector.shape_cast %169 : vector<16xf32> to vector<16x1xf32>
    %cst_77 = arith.constant 3.200000e+01 : f32
    %171 = vector.broadcast %cst_77 : f32 to vector<16x1xf32>
    %172 = arith.divf %170, %171 : vector<16x1xf32>
    %173 = vector.broadcast %165 : vector<16x1xf32> to vector<16x32xf32>
    %174 = arith.subf %161, %173 : vector<16x32xf32>
    %cst_78 = arith.constant 9.99999974E-6 : f32
    %175 = vector.broadcast %cst_78 : f32 to vector<16x1xf32>
    %176 = arith.addf %172, %175 : vector<16x1xf32>
    %177 = math.rsqrt %176 : vector<16x1xf32>
    %178 = vector.broadcast %177 : vector<16x1xf32> to vector<16x32xf32>
    %179 = arith.mulf %174, %178 : vector<16x32xf32>
    %180 = vector.broadcast %103 : vector<1x32xf32> to vector<16x32xf32>
    %181 = arith.mulf %179, %180 : vector<16x32xf32>
    %182 = vector.broadcast %105 : vector<1x32xf32> to vector<16x32xf32>
    %183 = arith.addf %181, %182 : vector<16x32xf32>
    %c1 = arith.constant 1 : index
    %c0_79 = arith.constant 0 : index
    %c0_80 = arith.constant 0 : index
    %184 = vector.load %arg3[%c1, %c0_79, %c0_80] : memref<2x72x128xf32, #tpu.memory_space<vmem>>, vector<1x32x128xf32>
    %185 = vector.shape_cast %184 : vector<1x32x128xf32> to vector<32x128xf32>
    %c1_81 = arith.constant 1 : index
    %c0_82 = arith.constant 0 : index
    %c96_83 = arith.constant 96 : index
    %186 = vector.load %arg3[%c1_81, %c0_82, %c96_83] : memref<2x72x128xf32, #tpu.memory_space<vmem>>, vector<1x32x32xf32>
    %187 = vector.shape_cast %186 : vector<1x32x32xf32> to vector<32x32xf32>
    %c1_84 = arith.constant 1 : index
    %c32_85 = arith.constant 32 : index
    %c0_86 = arith.constant 0 : index
    %188 = vector.load %arg3[%c1_84, %c32_85, %c0_86] : memref<2x72x128xf32, #tpu.memory_space<vmem>>, vector<1x32x128xf32>
    %189 = vector.shape_cast %188 : vector<1x32x128xf32> to vector<32x128xf32>
    %c1_87 = arith.constant 1 : index
    %c0_88 = arith.constant 0 : index
    %c0_89 = arith.constant 0 : index
    %190 = vector.load %arg4[%c1_87, %c0_88, %c0_89] : memref<2x128x32xf32, #tpu.memory_space<vmem>>, vector<1x128x32xf32>
    %191 = vector.shape_cast %190 : vector<1x128x32xf32> to vector<128x32xf32>
    %c1_90 = arith.constant 1 : index
    %c64_91 = arith.constant 64 : index
    %c0_92 = arith.constant 0 : index
    %192 = vector.load %arg3[%c1_90, %c64_91, %c0_92] : memref<2x72x128xf32, #tpu.memory_space<vmem>>, vector<1x1x128xf32>
    %193 = vector.shape_cast %192 : vector<1x1x128xf32> to vector<1x128xf32>
    %c1_93 = arith.constant 1 : index
    %c65_94 = arith.constant 65 : index
    %c0_95 = arith.constant 0 : index
    %194 = vector.load %arg3[%c1_93, %c65_94, %c0_95] : memref<2x72x128xf32, #tpu.memory_space<vmem>>, vector<1x1x128xf32>
    %195 = vector.shape_cast %194 : vector<1x1x128xf32> to vector<1x128xf32>
    %c1_96 = arith.constant 1 : index
    %c66_97 = arith.constant 66 : index
    %c0_98 = arith.constant 0 : index
    %196 = vector.load %arg3[%c1_96, %c66_97, %c0_98] : memref<2x72x128xf32, #tpu.memory_space<vmem>>, vector<1x1x32xf32>
    %197 = vector.shape_cast %196 : vector<1x1x32xf32> to vector<1x32xf32>
    %c1_99 = arith.constant 1 : index
    %c67_100 = arith.constant 67 : index
    %c0_101 = arith.constant 0 : index
    %198 = vector.load %arg3[%c1_99, %c67_100, %c0_101] : memref<2x72x128xf32, #tpu.memory_space<vmem>>, vector<1x1x32xf32>
    %199 = vector.shape_cast %198 : vector<1x1x32xf32> to vector<1x32xf32>
    %c1_102 = arith.constant 1 : index
    %c68_103 = arith.constant 68 : index
    %c0_104 = arith.constant 0 : index
    %200 = vector.load %arg3[%c1_102, %c68_103, %c0_104] : memref<2x72x128xf32, #tpu.memory_space<vmem>>, vector<1x1x32xf32>
    %201 = vector.shape_cast %200 : vector<1x1x32xf32> to vector<1x32xf32>
    %c1_105 = arith.constant 1 : index
    %c69_106 = arith.constant 69 : index
    %c0_107 = arith.constant 0 : index
    %202 = vector.load %arg3[%c1_105, %c69_106, %c0_107] : memref<2x72x128xf32, #tpu.memory_space<vmem>>, vector<1x1x32xf32>
    %203 = vector.shape_cast %202 : vector<1x1x32xf32> to vector<1x32xf32>
    %c1_108 = arith.constant 1 : index
    %c70_109 = arith.constant 70 : index
    %c0_110 = arith.constant 0 : index
    %204 = vector.load %arg3[%c1_108, %c70_109, %c0_110] : memref<2x72x128xf32, #tpu.memory_space<vmem>>, vector<1x1x32xf32>
    %205 = vector.shape_cast %204 : vector<1x1x32xf32> to vector<1x32xf32>
    %c1_111 = arith.constant 1 : index
    %c71_112 = arith.constant 71 : index
    %c0_113 = arith.constant 0 : index
    %206 = vector.load %arg3[%c1_111, %c71_112, %c0_113] : memref<2x72x128xf32, #tpu.memory_space<vmem>>, vector<1x1x32xf32>
    %207 = vector.shape_cast %206 : vector<1x1x32xf32> to vector<1x32xf32>
    %cst_114 = arith.constant dense<0.000000e+00> : vector<16x128xf32>
    %208 = tpu.matmul %183, %185, %cst_114 {dimension_numbers = #tpu.dot_dimension_numbers<[1], [0], [0], [1], [0, 0, 1, 1], [], []>} : vector<16x32xf32>, vector<32x128xf32>, vector<16x128xf32> -> vector<16x128xf32>
    %209 = vector.broadcast %193 : vector<1x128xf32> to vector<16x128xf32>
    %210 = arith.addf %208, %209 : vector<16x128xf32>
    %211 = vector.extract_strided_slice %210 {offsets = [0, 0], sizes = [16, 32], strides = [1, 1]} : vector<16x128xf32> to vector<16x32xf32>
    %212 = vector.extract_strided_slice %210 {offsets = [0, 32], sizes = [16, 64], strides = [1, 1]} : vector<16x128xf32> to vector<16x64xf32>
    %cst_115 = arith.constant dense<0.000000e+00> : vector<128x64xf32>
    %213 = tpu.matmul %7, %212, %cst_115 {dimension_numbers = #tpu.dot_dimension_numbers<[1], [0], [0], [1], [0, 0, 1, 1], [], []>} : vector<128x16xf32>, vector<16x64xf32>, vector<128x64xf32> -> vector<128x64xf32>
    %214 = arith.mulf %213, %19 : vector<128x64xf32>
    %215 = vector.extract_strided_slice %214 {offsets = [0, 0], sizes = [128, 32], strides = [1, 1]} : vector<128x64xf32> to vector<128x32xf32>
    %216 = vector.extract_strided_slice %214 {offsets = [0, 32], sizes = [128, 32], strides = [1, 1]} : vector<128x64xf32> to vector<128x32xf32>
    %cst_116 = arith.constant dense<0.000000e+00> : vector<16x128xf32>
    %217 = tpu.matmul %211, %215, %cst_116 {dimension_numbers = #tpu.dot_dimension_numbers<[1], [1], [0], [0], [0, 0, 1, 0], [], []>} : vector<16x32xf32>, vector<128x32xf32>, vector<16x128xf32> -> vector<16x128xf32>
    %cst_117 = arith.constant dense<0xFF800000> : vector<16xf32>
    %218 = vector.multi_reduction <maximumf>, %217, %cst_117 [1] : vector<16x128xf32> to vector<16xf32>
    %219 = vector.shape_cast %218 : vector<16xf32> to vector<16x1xf32>
    %220 = vector.broadcast %219 : vector<16x1xf32> to vector<16x128xf32>
    %221 = arith.subf %217, %220 : vector<16x128xf32>
    %222 = math.exp %221 : vector<16x128xf32>
    %cst_118 = arith.constant dense<0.000000e+00> : vector<16x128xf32>
    %223 = tpu.matmul %222, %41, %cst_118 {dimension_numbers = #tpu.dot_dimension_numbers<[1], [0], [0], [1], [0, 0, 1, 1], [], []>} : vector<16x128xf32>, vector<128x128xf32>, vector<16x128xf32> -> vector<16x128xf32>
    %224 = arith.mulf %222, %31 : vector<16x128xf32>
    %225 = arith.divf %224, %223 : vector<16x128xf32>
    %cst_119 = arith.constant dense<0.000000e+00> : vector<16x32xf32>
    %226 = tpu.matmul %225, %216, %cst_119 {dimension_numbers = #tpu.dot_dimension_numbers<[1], [0], [0], [1], [0, 0, 1, 1], [], []>} : vector<16x128xf32>, vector<128x32xf32>, vector<16x32xf32> -> vector<16x32xf32>
    %cst_120 = arith.constant dense<0.000000e+00> : vector<16x32xf32>
    %227 = tpu.matmul %226, %187, %cst_120 {dimension_numbers = #tpu.dot_dimension_numbers<[1], [0], [0], [1], [0, 0, 1, 1], [], []>} : vector<16x32xf32>, vector<32x32xf32>, vector<16x32xf32> -> vector<16x32xf32>
    %228 = vector.broadcast %197 : vector<1x32xf32> to vector<16x32xf32>
    %229 = arith.addf %227, %228 : vector<16x32xf32>
    %230 = arith.addf %183, %229 : vector<16x32xf32>
    %cst_121 = arith.constant dense<0.000000e+00> : vector<16xf32>
    %231 = vector.multi_reduction <add>, %230, %cst_121 [1] : vector<16x32xf32> to vector<16xf32>
    %232 = vector.shape_cast %231 : vector<16xf32> to vector<16x1xf32>
    %cst_122 = arith.constant 3.200000e+01 : f32
    %233 = vector.broadcast %cst_122 : f32 to vector<16x1xf32>
    %234 = arith.divf %232, %233 : vector<16x1xf32>
    %235 = vector.broadcast %234 : vector<16x1xf32> to vector<16x32xf32>
    %236 = arith.subf %230, %235 : vector<16x32xf32>
    %237 = arith.mulf %236, %236 : vector<16x32xf32>
    %cst_123 = arith.constant dense<0.000000e+00> : vector<16xf32>
    %238 = vector.multi_reduction <add>, %237, %cst_123 [1] : vector<16x32xf32> to vector<16xf32>
    %239 = vector.shape_cast %238 : vector<16xf32> to vector<16x1xf32>
    %cst_124 = arith.constant 3.200000e+01 : f32
    %240 = vector.broadcast %cst_124 : f32 to vector<16x1xf32>
    %241 = arith.divf %239, %240 : vector<16x1xf32>
    %242 = vector.broadcast %234 : vector<16x1xf32> to vector<16x32xf32>
    %243 = arith.subf %230, %242 : vector<16x32xf32>
    %cst_125 = arith.constant 9.99999974E-6 : f32
    %244 = vector.broadcast %cst_125 : f32 to vector<16x1xf32>
    %245 = arith.addf %241, %244 : vector<16x1xf32>
    %246 = math.rsqrt %245 : vector<16x1xf32>
    %247 = vector.broadcast %246 : vector<16x1xf32> to vector<16x32xf32>
    %248 = arith.mulf %243, %247 : vector<16x32xf32>
    %249 = vector.broadcast %199 : vector<1x32xf32> to vector<16x32xf32>
    %250 = arith.mulf %248, %249 : vector<16x32xf32>
    %251 = vector.broadcast %201 : vector<1x32xf32> to vector<16x32xf32>
    %252 = arith.addf %250, %251 : vector<16x32xf32>
    %cst_126 = arith.constant dense<0.000000e+00> : vector<16x128xf32>
    %253 = tpu.matmul %252, %189, %cst_126 {dimension_numbers = #tpu.dot_dimension_numbers<[1], [0], [0], [1], [0, 0, 1, 1], [], []>} : vector<16x32xf32>, vector<32x128xf32>, vector<16x128xf32> -> vector<16x128xf32>
    %254 = vector.broadcast %195 : vector<1x128xf32> to vector<16x128xf32>
    %255 = arith.addf %253, %254 : vector<16x128xf32>
    %cst_127 = arith.constant 0.000000e+00 : f32
    %256 = vector.broadcast %cst_127 : f32 to vector<16x128xf32>
    %257 = arith.maximumf %255, %256 : vector<16x128xf32>
    %cst_128 = arith.constant dense<0.000000e+00> : vector<16x32xf32>
    %258 = tpu.matmul %257, %191, %cst_128 {dimension_numbers = #tpu.dot_dimension_numbers<[1], [0], [0], [1], [0, 0, 1, 1], [], []>} : vector<16x128xf32>, vector<128x32xf32>, vector<16x32xf32> -> vector<16x32xf32>
    %259 = vector.broadcast %207 : vector<1x32xf32> to vector<16x32xf32>
    %260 = arith.addf %258, %259 : vector<16x32xf32>
    %261 = arith.addf %252, %260 : vector<16x32xf32>
    %cst_129 = arith.constant dense<0.000000e+00> : vector<16xf32>
    %262 = vector.multi_reduction <add>, %261, %cst_129 [1] : vector<16x32xf32> to vector<16xf32>
    %263 = vector.shape_cast %262 : vector<16xf32> to vector<16x1xf32>
    %cst_130 = arith.constant 3.200000e+01 : f32
    %264 = vector.broadcast %cst_130 : f32 to vector<16x1xf32>
    %265 = arith.divf %263, %264 : vector<16x1xf32>
    %266 = vector.broadcast %265 : vector<16x1xf32> to vector<16x32xf32>
    %267 = arith.subf %261, %266 : vector<16x32xf32>
    %268 = arith.mulf %267, %267 : vector<16x32xf32>
    %cst_131 = arith.constant dense<0.000000e+00> : vector<16xf32>
    %269 = vector.multi_reduction <add>, %268, %cst_131 [1] : vector<16x32xf32> to vector<16xf32>
    %270 = vector.shape_cast %269 : vector<16xf32> to vector<16x1xf32>
    %cst_132 = arith.constant 3.200000e+01 : f32
    %271 = vector.broadcast %cst_132 : f32 to vector<16x1xf32>
    %272 = arith.divf %270, %271 : vector<16x1xf32>
    %273 = vector.broadcast %265 : vector<16x1xf32> to vector<16x32xf32>
    %274 = arith.subf %261, %273 : vector<16x32xf32>
    %cst_133 = arith.constant 9.99999974E-6 : f32
    %275 = vector.broadcast %cst_133 : f32 to vector<16x1xf32>
    %276 = arith.addf %272, %275 : vector<16x1xf32>
    %277 = math.rsqrt %276 : vector<16x1xf32>
    %278 = vector.broadcast %277 : vector<16x1xf32> to vector<16x32xf32>
    %279 = arith.mulf %274, %278 : vector<16x32xf32>
    %280 = vector.broadcast %203 : vector<1x32xf32> to vector<16x32xf32>
    %281 = arith.mulf %279, %280 : vector<16x32xf32>
    %282 = vector.broadcast %205 : vector<1x32xf32> to vector<16x32xf32>
    %283 = arith.addf %281, %282 : vector<16x32xf32>
    %cst_134 = arith.constant dense<0.000000e+00> : vector<2x32xf32>
    %284 = tpu.matmul %49, %283, %cst_134 {dimension_numbers = #tpu.dot_dimension_numbers<[1], [0], [0], [1], [0, 0, 1, 1], [], []>} : vector<2x16xf32>, vector<16x32xf32>, vector<2x32xf32> -> vector<2x32xf32>
    %cst_135 = arith.constant dense<0.000000e+00> : vector<2x128xf32>
    %285 = tpu.matmul %284, %52, %cst_135 {dimension_numbers = #tpu.dot_dimension_numbers<[1], [0], [0], [1], [0, 0, 1, 1], [], []>} : vector<2x32xf32>, vector<32x128xf32>, vector<2x128xf32> -> vector<2x128xf32>
    %286 = vector.broadcast %56 : vector<1x128xf32> to vector<2x128xf32>
    %287 = arith.addf %285, %286 : vector<2x128xf32>
    %c0_136 = arith.constant 0 : index
    %c0_137 = arith.constant 0 : index
    %288 = vector.load %arg5[%c0_136, %c0_137] : memref<2x128xf32, #tpu.memory_space<vmem>>, vector<2x128xf32>
    tpu.vector_store %arg5[%c0_136, %c0_137], %287 {strides = array<i32>} : memref<2x128xf32, #tpu.memory_space<vmem>>, vector<2x128xf32>,
    return
  }
  func.func @transform_0(%arg0: i32) -> (i32, i32) {
    %c0_i32 = arith.constant 0 : i32
    %c0_i32_0 = arith.constant 0 : i32
    %c0_i32_1 = arith.constant 0 : i32
    return %c0_i32, %c0_i32_0 : i32, i32
  }
  func.func @transform_1(%arg0: i32) -> (i32, i32) {
    %c0_i32 = arith.constant 0 : i32
    %c0_i32_0 = arith.constant 0 : i32
    %c0_i32_1 = arith.constant 0 : i32
    return %c0_i32, %c0_i32_0 : i32, i32
  }
  func.func @transform_2(%arg0: i32) -> (i32, i32, i32) {
    %c0_i32 = arith.constant 0 : i32
    %c0_i32_0 = arith.constant 0 : i32
    %c0_i32_1 = arith.constant 0 : i32
    %c0_i32_2 = arith.constant 0 : i32
    return %c0_i32, %c0_i32_0, %c0_i32_1 : i32, i32, i32
  }
  func.func @transform_3(%arg0: i32) -> (i32, i32, i32) {
    %c0_i32 = arith.constant 0 : i32
    %c0_i32_0 = arith.constant 0 : i32
    %c0_i32_1 = arith.constant 0 : i32
    %c0_i32_2 = arith.constant 0 : i32
    return %c0_i32, %c0_i32_0, %c0_i32_1 : i32, i32, i32
  }
  func.func @transform_4(%arg0: i32) -> (i32, i32) {
    %c0_i32 = arith.constant 0 : i32
    %c0_i32_0 = arith.constant 0 : i32
    %c0_i32_1 = arith.constant 0 : i32
    return %c0_i32, %c0_i32_0 : i32, i32
  }
}

</mosaic_0001>

<llo_original>
// kernel: tpu_custom_call.1
$region0: #{tpu_custom_call.1}
  #allocation0 [shape = 'u32[]', space=smem, size = 0x4, offset = 0x4, fixed_abs, tag = 'smem constant byte address 0x4 - core index']
  #allocation1 [shape = 'u32[72,128]{1,0:T(1,128)}', space=vmem, size = 0x9000, scoped, tag = 'internal scratch']
  %s0 = inlined_call_operand.vmem [shape: f32[16,16], index: 0, kind: input, shape index: {}]
  %s1 = inlined_call_operand.vmem [shape: f32[72,128], index: 1, kind: input, shape index: {}]
  %s2 = inlined_call_operand.vmem [shape: f32[2,72,128], index: 2, kind: input, shape index: {}]
  %s3 = inlined_call_operand.vmem [shape: f32[2,128,32], index: 3, kind: input, shape index: {}]
  %s4 = inlined_call_operand.hbm [shape: f32[2,128], index: 4, kind: output, shape index: {}]
  %s5 = sld [smem:[#allocation0]]
  $region26: #{tpu_custom_call.1} parent=0
    _
  %s7 = ssub.s32 1, %s5
  %s8 = scalar_select 0, %s7, %s5
  $region1: #{tpu_custom_call.1} parent=0
    #allocation2 [shape = 'u8[1024]{0}', space=vmem, size = 0x400, scoped, tag = 'output window, operand 0, single buffered']
    #allocation3 [shape = 's32[1]{0}', space=sflag, size = 0x4, scoped, tag = 'scoped memory for tpu_custom_call.1']
    %9 = vsyncpa [#allocation3], 0
    // Predicated region
    $region2: #{tpu_custom_call.1} parent=1 // pred_check
      _
    $region3: #{tpu_custom_call.1} parent=1 // pred_check_branch
      %11 = sbr.rel (0) target = $region5
    $region4: #{tpu_custom_call.1} parent=1 // pred_region
      _
    $region5: #{tpu_custom_call.1} parent=1 // pred_fallthru
      _
    // Predicated region
    $region6: #{tpu_custom_call.1} parent=1 // pred_check
      _
    $region7: #{tpu_custom_call.1} parent=1 // pred_check_branch
      %13 = sbr.rel (0) target = $region9
    $region8: #{tpu_custom_call.1} parent=1 // pred_region
      _
    $region9: #{tpu_custom_call.1} parent=1 // pred_fallthru
      _
    // Predicated region
    $region10: #{tpu_custom_call.1} parent=1 // pred_check
      _
    $region11: #{tpu_custom_call.1} parent=1 // pred_check_branch
      %15 = sbr.rel (0) target = $region13
    $region12: #{tpu_custom_call.1} parent=1 // pred_region
      _
    $region13: #{tpu_custom_call.1} parent=1 // pred_fallthru
      _
    // Predicated region
    $region14: #{tpu_custom_call.1} parent=1 // pred_check
      _
    $region15: #{tpu_custom_call.1} parent=1 // pred_check_branch
      %17 = sbr.rel (0) target = $region17
    $region16: #{tpu_custom_call.1} parent=1 // pred_region
      _
    $region17: #{tpu_custom_call.1} parent=1 // pred_fallthru
      _
    %v18 = vlaneseq
    %v19 = vshrl.u32 %v18, 7
    %v20 = vadd.s32 %v19, 8
    %v21 = vadd.s32 %v19, 16
    %v22 = vadd.s32 %v19, 24
    %v23 = vadd.s32 %v19, 32
    %v24 = vadd.s32 %v19, 40
    %v25 = vadd.s32 %v19, 48
    %v26 = vadd.s32 %v19, 56
    %v27 = vadd.s32 %v19, 64
    %v28 = vadd.s32 %v19, 72
    %v29 = vadd.s32 %v19, 80
    %v30 = vadd.s32 %v19, 88
    %v31 = vadd.s32 %v19, 96
    %v32 = vadd.s32 %v19, 104
    %v33 = vadd.s32 %v19, 112
    %v34 = vadd.s32 %v19, 120
    %v35 = vand.u32 %v19, 15
    %v36 = vand.u32 %v20, 15
    %v37 = vand.u32 %v21, 15
    %v38 = vand.u32 %v22, 15
    %v39 = vand.u32 %v23, 15
    %v40 = vand.u32 %v24, 15
    %v41 = vand.u32 %v25, 15
    %v42 = vand.u32 %v26, 15
    %v43 = vand.u32 %v27, 15
    %v44 = vand.u32 %v28, 15
    %v45 = vand.u32 %v29, 15
    %v46 = vand.u32 %v30, 15
    %v47 = vand.u32 %v31, 15
    %v48 = vand.u32 %v32, 15
    %v49 = vand.u32 %v33, 15
    %v50 = vand.u32 %v34, 15
    %v51 = vlaneseq
    %v52 = vand.u32 %v51, 127
    %vm53 = vcmp.eq.s32.totalorder %v35, %v52
    %vm54 = vcmp.eq.s32.totalorder %v36, %v52
    %vm55 = vcmp.eq.s32.totalorder %v37, %v52
    %vm56 = vcmp.eq.s32.totalorder %v38, %v52
    %vm57 = vcmp.eq.s32.totalorder %v39, %v52
    %vm58 = vcmp.eq.s32.totalorder %v40, %v52
    %vm59 = vcmp.eq.s32.totalorder %v41, %v52
    %vm60 = vcmp.eq.s32.totalorder %v42, %v52
    %vm61 = vcmp.eq.s32.totalorder %v43, %v52
    %vm62 = vcmp.eq.s32.totalorder %v44, %v52
    %vm63 = vcmp.eq.s32.totalorder %v45, %v52
    %vm64 = vcmp.eq.s32.totalorder %v46, %v52
    %vm65 = vcmp.eq.s32.totalorder %v47, %v52
    %vm66 = vcmp.eq.s32.totalorder %v48, %v52
    %vm67 = vcmp.eq.s32.totalorder %v49, %v52
    %vm68 = vcmp.eq.s32.totalorder %v50, %v52
    %v69 = vsel %vm53, 1.0, 0.0
    %v70 = vsel %vm54, 1.0, 0.0
    %v71 = vsel %vm55, 1.0, 0.0
    %v72 = vsel %vm56, 1.0, 0.0
    %v73 = vsel %vm57, 1.0, 0.0
    %v74 = vsel %vm58, 1.0, 0.0
    %v75 = vsel %vm59, 1.0, 0.0
    %v76 = vsel %vm60, 1.0, 0.0
    %v77 = vsel %vm61, 1.0, 0.0
    %v78 = vsel %vm62, 1.0, 0.0
    %v79 = vsel %vm63, 1.0, 0.0
    %v80 = vsel %vm64, 1.0, 0.0
    %v81 = vsel %vm65, 1.0, 0.0
    %v82 = vsel %vm66, 1.0, 0.0
    %v83 = vsel %vm67, 1.0, 0.0
    %v84 = vsel %vm68, 1.0, 0.0
    %v85 = vand.u32 %v52, 31
    %v86 = vshra.s32 %v85, 2
    %v87 = vshra.s32 %v19, 4
    %v88 = vshra.s32 %v20, 4
    %v89 = vshra.s32 %v21, 4
    %v90 = vshra.s32 %v22, 4
    %v91 = vshra.s32 %v23, 4
    %v92 = vshra.s32 %v24, 4
    %v93 = vshra.s32 %v25, 4
    %v94 = vshra.s32 %v26, 4
    %v95 = vshra.s32 %v27, 4
    %v96 = vshra.s32 %v28, 4
    %v97 = vshra.s32 %v29, 4
    %v98 = vshra.s32 %v30, 4
    %v99 = vshra.s32 %v31, 4
    %v100 = vshra.s32 %v32, 4
    %v101 = vshra.s32 %v33, 4
    %v102 = vshra.s32 %v34, 4
    %vm103 = vcmp.eq.s32.totalorder %v86, %v87
    %vm104 = vcmp.eq.s32.totalorder %v86, %v88
    %vm105 = vcmp.eq.s32.totalorder %v86, %v89
    %vm106 = vcmp.eq.s32.totalorder %v86, %v90
    %vm107 = vcmp.eq.s32.totalorder %v86, %v91
    %vm108 = vcmp.eq.s32.totalorder %v86, %v92
    %vm109 = vcmp.eq.s32.totalorder %v86, %v93
    %vm110 = vcmp.eq.s32.totalorder %v86, %v94
    %vm111 = vcmp.eq.s32.totalorder %v86, %v95
    %vm112 = vcmp.eq.s32.totalorder %v86, %v96
    %vm113 = vcmp.eq.s32.totalorder %v86, %v97
    %vm114 = vcmp.eq.s32.totalorder %v86, %v98
    %vm115 = vcmp.eq.s32.totalorder %v86, %v99
    %vm116 = vcmp.eq.s32.totalorder %v86, %v100
    %vm117 = vcmp.eq.s32.totalorder %v86, %v101
    %vm118 = vcmp.eq.s32.totalorder %v86, %v102
    %v119 = vsel %vm103, 1.0, 0.0
    %v120 = vsel %vm104, 1.0, 0.0
    %v121 = vsel %vm105, 1.0, 0.0
    %v122 = vsel %vm106, 1.0, 0.0
    %v123 = vsel %vm107, 1.0, 0.0
    %v124 = vsel %vm108, 1.0, 0.0
    %v125 = vsel %vm109, 1.0, 0.0
    %v126 = vsel %vm110, 1.0, 0.0
    %v127 = vsel %vm111, 1.0, 0.0
    %v128 = vsel %vm112, 1.0, 0.0
    %v129 = vsel %vm113, 1.0, 0.0
    %v130 = vsel %vm114, 1.0, 0.0
    %v131 = vsel %vm115, 1.0, 0.0
    %v132 = vsel %vm116, 1.0, 0.0
    %v133 = vsel %vm117, 1.0, 0.0
    %v134 = vsel %vm118, 1.0, 0.0
    %v135 = vshra.s32 %v52, 3
    %v136 = vand.u32 %v135, 1
    %v137 = vshra.s32 %v19, 3
    %v138 = vshra.s32 %v20, 3
    %vm139 = vcmp.eq.s32.totalorder %v136, %v137
    %vm140 = vcmp.eq.s32.totalorder %v136, %v138
    %v141 = vsel %vm139, 1.0, 0.0
    %v142 = vsel %vm140, 1.0, 0.0
    %v143 = vshra.s32 %v21, 3
    %v144 = vshra.s32 %v22, 3
    %v145 = vshra.s32 %v23, 3
    %v146 = vshra.s32 %v24, 3
    %v147 = vshra.s32 %v25, 3
    %v148 = vshra.s32 %v26, 3
    %v149 = vshra.s32 %v27, 3
    %v150 = vshra.s32 %v28, 3
    %v151 = vshra.s32 %v29, 3
    %v152 = vshra.s32 %v30, 3
    %v153 = vshra.s32 %v31, 3
    %v154 = vshra.s32 %v32, 3
    %v155 = vshra.s32 %v33, 3
    %v156 = vshra.s32 %v34, 3
    %vm157 = vcmp.eq.s32.totalorder %v137, %v135
    %vm158 = vcmp.eq.s32.totalorder %v138, %v135
    %vm159 = vcmp.eq.s32.totalorder %v143, %v135
    %vm160 = vcmp.eq.s32.totalorder %v144, %v135
    %vm161 = vcmp.eq.s32.totalorder %v145, %v135
    %vm162 = vcmp.eq.s32.totalorder %v146, %v135
    %vm163 = vcmp.eq.s32.totalorder %v147, %v135
    %vm164 = vcmp.eq.s32.totalorder %v148, %v135
    %vm165 = vcmp.eq.s32.totalorder %v149, %v135
    %vm166 = vcmp.eq.s32.totalorder %v150, %v135
    %vm167 = vcmp.eq.s32.totalorder %v151, %v135
    %vm168 = vcmp.eq.s32.totalorder %v152, %v135
    %vm169 = vcmp.eq.s32.totalorder %v153, %v135
    %vm170 = vcmp.eq.s32.totalorder %v154, %v135
    %vm171 = vcmp.eq.s32.totalorder %v155, %v135
    %vm172 = vcmp.eq.s32.totalorder %v156, %v135
    %v173 = vsel %vm157, 1.0, 0.0
    %v174 = vsel %vm158, 1.0, 0.0
    %v175 = vsel %vm159, 1.0, 0.0
    %v176 = vsel %vm160, 1.0, 0.0
    %v177 = vsel %vm161, 1.0, 0.0
    %v178 = vsel %vm162, 1.0, 0.0
    %v179 = vsel %vm163, 1.0, 0.0
    %v180 = vsel %vm164, 1.0, 0.0
    %v181 = vsel %vm165, 1.0, 0.0
    %v182 = vsel %vm166, 1.0, 0.0
    %v183 = vsel %vm167, 1.0, 0.0
    %v184 = vsel %vm168, 1.0, 0.0
    %v185 = vsel %vm169, 1.0, 0.0
    %v186 = vsel %vm170, 1.0, 0.0
    %v187 = vsel %vm171, 1.0, 0.0
    %v188 = vsel %vm172, 1.0, 0.0
    %vm189 = vcmp.eq.s32.totalorder %v135, %v19
    %v190 = vsel %vm189, 0.125, 0.0
    %v191 = vld [vmem:[%s1] sm:$0xff]
    %v192 = vld [vmem:[%s1 + $0x8] sm:$0xff]
    %v193 = vld [vmem:[%s1 + $0x10] sm:$0xff]
    %v194 = vld [vmem:[%s1 + $0x18] sm:$0xff]
    %v195 = vld [vmem:[%s1 + $0x20] sm:$0xff]
    %v196 = vld [vmem:[%s1 + $0x28] sm:$0xff]
    %v197 = vld [vmem:[%s1 + $0x30] sm:$0xff]
    %v198 = vld [vmem:[%s1 + $0x38] sm:$0xff]
    %v199 = vld [vmem:[%s1 + $0x40] sm:$0x1]
    %v200 = vld [vmem:[%s1 + $0x41] sm:$0x1]
    %v201 = vld [vmem:[%s0] sm:$0xff]
    %v202 = vld [vmem:[%s0 + $0x8] sm:$0xff]
    %v203 = vperm.slane %v199, 0
    %vm204 = vcmask 130048
    %v206 = vsel %vm204, %v201, 0
    %v209 = vsel %vm204, %v202, 0
    %211 = vmatpush.msra.mxu0 0.0
    %212 = vmatpush.msra.mxu0 0.0
    %213 = vmatpush.msra.mxu0 0.0
    %214 = vmatpush.msra.mxu0 0.0
    %215 = vmatpush.msra.mxu0 0.0
    %216 = vmatpush.msra.mxu0 0.0
    %217 = vmatpush.msra.mxu0 0.0
    %218 = vmatpush.msra.mxu0 0.0
    %219 = vmatpush.msra.mxu0 0.0
    %220 = vmatpush.msra.mxu0 0.0
    %221 = vmatpush.msra.mxu0 0.0
    %222 = vmatpush.msra.mxu0 0.0
    %223 = vmatpush.msra.mxu0 0.0
    %224 = vmatpush.msra.mxu0 0.0
    %225 = vmatpush.msra.mxu0 %v192
    %226 = vmatpush.msra.mxu0 %v191
    %227 = vmatmul.f32.gmra.mxu0 %v206
    %v228 = vpop.f32.mrf.mxu0
    %v229 = vadd.f32 %v203, %v228
    %230 = vmatmul.f32.gmra.mxu0 %v209
    %v231 = vpop.f32.mrf.mxu0
    %v232 = vadd.f32 %v203, %v231
    %233 = vdwg.mxu0
    %v234 = vadd.f32 %v229, %v193
    %v235 = vadd.f32 %v232, %v194
    %vm236 = vcmask 261120
    %v237 = vsel %vm236, %v234, 0.0
    %238 = vadd.xlane.f32.xlu0 %v237
    %v239 = vpop.xlane.xlu0 %238
    %v240 = vsel %vm236, %v235, 0.0
    %241 = vadd.xlane.f32.xlu0 %v240
    %v242 = vpop.xlane.xlu0 %241
    %v243 = vrcp.pop 32.0
    %v244 = vmul.f32 32.0, %v243
    %v245 = vsub.f32 1.0, %v244
    %v246 = vmul.f32 %v243, %v245
    %v247 = vadd.f32 %v243, %v246
    %vm248 = vweird.f32 %v243
    %v249 = vsel %vm248, %v243, %v247
    %v250 = vmul.f32 %v239, %v249
    %v251 = vmul.f32 %v242, %v249
    %v252 = vsub.f32 %v234, %v250
    %v253 = vsub.f32 %v235, %v251
    %v254 = vmul.f32 %v252, %v252
    %v255 = vmul.f32 %v253, %v253
    %v256 = vsel %vm236, %v254, 0.0
    %257 = vadd.xlane.f32.xlu0 %v256
    %v258 = vpop.xlane.xlu0 %257
    %v259 = vsel %vm236, %v255, 0.0
    %260 = vadd.xlane.f32.xlu0 %v259
    %v261 = vpop.xlane.xlu0 %260
    %v262 = vmul.f32 %v258, %v249
    %v263 = vmul.f32 %v261, %v249
    %v264 = vadd.f32 %v262, 1e-05
    %v265 = vadd.f32 %v263, 1e-05
    %v266 = vrsqrt.pop %v264
    %v267 = vmul.f32 %v266, %v264
    %v268 = vmul.f32 %v267, %v266
    %v269 = vmul.f32 0.5, %v268
    %v270 = vsub.f32 1.5, %v269
    %v271 = vmul.f32 %v266, %v270
    %vm272 = vweird.f32 %v264
    %vm273 = vweird.f32 %v266
    %vm274 = vmor %vm272, %vm273
    %v275 = vsel %vm274, %v266, %v271
    %v276 = vrsqrt.pop %v265
    %v277 = vmul.f32 %v276, %v265
    %v278 = vmul.f32 %v277, %v276
    %v279 = vmul.f32 0.5, %v278
    %v280 = vsub.f32 1.5, %v279
    %v281 = vmul.f32 %v276, %v280
    %vm282 = vweird.f32 %v265
    %vm283 = vweird.f32 %v276
    %vm284 = vmor %vm282, %vm283
    %v285 = vsel %vm284, %v276, %v281
    %v286 = vmul.f32 %v252, %v275
    %v287 = vmul.f32 %v253, %v285
    %289 = vrot.lane.b32.xlu0 %v203, 96
    %v290 = vpop.permute.xlu0 %289
    %v292 = vmul.f32 %v286, %v290
    %v293 = vmul.f32 %v287, %v290
    %294 = vrot.lane.b32.xlu0 %v203, 64
    %v295 = vpop.permute.xlu0 %294
    %v297 = vadd.f32 %v292, %v295
    %v298 = vadd.f32 %v293, %v295
    %v299 = vld [vmem:[%s2] sm:$0xff]
    %v300 = vld [vmem:[%s2 + $0x8] sm:$0xff]
    %v301 = vld [vmem:[%s2 + $0x10] sm:$0xff]
    %v302 = vld [vmem:[%s2 + $0x18] sm:$0xff]
    %v303 = vld [vmem:[%s2 + $0x20] sm:$0xff]
    %v304 = vld [vmem:[%s2 + $0x28] sm:$0xff]
    %v305 = vld [vmem:[%s2 + $0x30] sm:$0xff]
    %v306 = vld [vmem:[%s2 + $0x38] sm:$0xff]
    %v307 = vld [vmem:[%s3] sm:$0xff]
    %v308 = vld [vmem:[%s3 + $0x8] sm:$0xff]
    %v309 = vld [vmem:[%s3 + $0x10] sm:$0xff]
    %v310 = vld [vmem:[%s3 + $0x18] sm:$0xff]
    %v311 = vld [vmem:[%s3 + $0x20] sm:$0xff]
    %v312 = vld [vmem:[%s3 + $0x28] sm:$0xff]
    %v313 = vld [vmem:[%s3 + $0x30] sm:$0xff]
    %v314 = vld [vmem:[%s3 + $0x38] sm:$0xff]
    %v315 = vld [vmem:[%s3 + $0x40] sm:$0xff]
    %v316 = vld [vmem:[%s3 + $0x48] sm:$0xff]
    %v317 = vld [vmem:[%s3 + $0x50] sm:$0xff]
    %v318 = vld [vmem:[%s3 + $0x58] sm:$0xff]
    %v319 = vld [vmem:[%s3 + $0x60] sm:$0xff]
    %v320 = vld [vmem:[%s3 + $0x68] sm:$0xff]
    %v321 = vld [vmem:[%s3 + $0x70] sm:$0xff]
    %v322 = vld [vmem:[%s3 + $0x78] sm:$0xff]
    %v323 = vld [vmem:[%s2 + $0x40] sm:$0x1]
    %v324 = vld [vmem:[%s2 + $0x41] sm:$0x1]
    %v325 = vld [vmem:[%s2 + $0x42] sm:$0x1]
    %v326 = vld [vmem:[%s2 + $0x43] sm:$0x1]
    %v327 = vld [vmem:[%s2 + $0x44] sm:$0x1]
    %v328 = vld [vmem:[%s2 + $0x45] sm:$0x1]
    %v329 = vld [vmem:[%s2 + $0x46] sm:$0x1]
    %v330 = vld [vmem:[%s2 + $0x47] sm:$0x1]
    %v331 = vperm.slane %v323, 0
    %v333 = vsel %vm236, %v297, 0
    %v336 = vsel %vm236, %v298, 0
    %338 = vmatpush.msra.mxu0 0.0
    %339 = vmatpush.msra.mxu0 0.0
    %340 = vmatpush.msra.mxu0 0.0
    %341 = vmatpush.msra.mxu0 0.0
    %342 = vmatpush.msra.mxu0 0.0
    %343 = vmatpush.msra.mxu0 0.0
    %344 = vmatpush.msra.mxu0 0.0
    %345 = vmatpush.msra.mxu0 0.0
    %346 = vmatpush.msra.mxu0 0.0
    %347 = vmatpush.msra.mxu0 0.0
    %348 = vmatpush.msra.mxu0 0.0
    %349 = vmatpush.msra.mxu0 0.0
    %350 = vmatpush.msra.mxu0 %v302
    %351 = vmatpush.msra.mxu0 %v301
    %352 = vmatpush.msra.mxu0 %v300
    %353 = vmatpush.msra.mxu0 %v299
    %354 = vmatmul.f32.gmra.mxu0 %v333
    %v355 = vpop.f32.mrf.mxu0
    %v356 = vadd.f32 %v331, %v355
    %357 = vmatmul.f32.gmra.mxu0 %v336
    %v358 = vpop.f32.mrf.mxu0
    %v359 = vadd.f32 %v331, %v358
    %360 = vdwg.mxu0
    %363 = vrot.lane.b32.xlu0 %v356, 96
    %v364 = vpop.permute.xlu0 %363
    %365 = vrot.lane.b32.xlu0 %v359, 96
    %v366 = vpop.permute.xlu0 %365
    %v370 = vsel %vm204, %v69, 0
    %v373 = vsel %vm204, %v70, 0
    %v376 = vsel %vm204, %v71, 0
    %v379 = vsel %vm204, %v72, 0
    %v382 = vsel %vm204, %v73, 0
    %v385 = vsel %vm204, %v74, 0
    %v388 = vsel %vm204, %v75, 0
    %v391 = vsel %vm204, %v76, 0
    %v394 = vsel %vm204, %v77, 0
    %v397 = vsel %vm204, %v78, 0
    %v400 = vsel %vm204, %v79, 0
    %v403 = vsel %vm204, %v80, 0
    %v406 = vsel %vm204, %v81, 0
    %v409 = vsel %vm204, %v82, 0
    %v412 = vsel %vm204, %v83, 0
    %v415 = vsel %vm204, %v84, 0
    %417 = vmatpush.msra.mxu0 0.0
    %418 = vmatpush.msra.mxu0 0.0
    %419 = vmatpush.msra.mxu0 0.0
    %420 = vmatpush.msra.mxu0 0.0
    %421 = vmatpush.msra.mxu0 0.0
    %422 = vmatpush.msra.mxu0 0.0
    %423 = vmatpush.msra.mxu0 0.0
    %424 = vmatpush.msra.mxu0 0.0
    %425 = vmatpush.msra.mxu0 0.0
    %426 = vmatpush.msra.mxu0 0.0
    %427 = vmatpush.msra.mxu0 0.0
    %428 = vmatpush.msra.mxu0 0.0
    %429 = vmatpush.msra.mxu0 0.0
    %430 = vmatpush.msra.mxu0 0.0
    %431 = vmatpush.msra.mxu0 %v366
    %432 = vmatpush.msra.mxu0 %v364
    %433 = vmatmul.f32.gmra.mxu0 %v370
    %v434 = vpop.f32.mrf.mxu0
    %v435 = vadd.f32 0.0, %v434
    %436 = vmatmul.f32.gmra.mxu0 %v373
    %v437 = vpop.f32.mrf.mxu0
    %v438 = vadd.f32 0.0, %v437
    %439 = vmatmul.f32.gmra.mxu0 %v376
    %v440 = vpop.f32.mrf.mxu0
    %v441 = vadd.f32 0.0, %v440
    %442 = vmatmul.f32.gmra.mxu0 %v379
    %v443 = vpop.f32.mrf.mxu0
    %v444 = vadd.f32 0.0, %v443
    %445 = vmatmul.f32.gmra.mxu0 %v382
    %v446 = vpop.f32.mrf.mxu0
    %v447 = vadd.f32 0.0, %v446
    %448 = vmatmul.f32.gmra.mxu0 %v385
    %v449 = vpop.f32.mrf.mxu0
    %v450 = vadd.f32 0.0, %v449
    %451 = vmatmul.f32.gmra.mxu0 %v388
    %v452 = vpop.f32.mrf.mxu0
    %v453 = vadd.f32 0.0, %v452
    %454 = vmatmul.f32.gmra.mxu0 %v391
    %v455 = vpop.f32.mrf.mxu0
    %v456 = vadd.f32 0.0, %v455
    %457 = vmatmul.f32.gmra.mxu0 %v394
    %v458 = vpop.f32.mrf.mxu0
    %v459 = vadd.f32 0.0, %v458
    %460 = vmatmul.f32.gmra.mxu0 %v397
    %v461 = vpop.f32.mrf.mxu0
    %v462 = vadd.f32 0.0, %v461
    %463 = vmatmul.f32.gmra.mxu0 %v400
    %v464 = vpop.f32.mrf.mxu0
    %v465 = vadd.f32 0.0, %v464
    %466 = vmatmul.f32.gmra.mxu0 %v403
    %v467 = vpop.f32.mrf.mxu0
    %v468 = vadd.f32 0.0, %v467
    %469 = vmatmul.f32.gmra.mxu0 %v406
    %v470 = vpop.f32.mrf.mxu0
    %v471 = vadd.f32 0.0, %v470
    %472 = vmatmul.f32.gmra.mxu0 %v409
    %v473 = vpop.f32.mrf.mxu0
    %v474 = vadd.f32 0.0, %v473
    %475 = vmatmul.f32.gmra.mxu0 %v412
    %v476 = vpop.f32.mrf.mxu0
    %v477 = vadd.f32 0.0, %v476
    %478 = vmatmul.f32.gmra.mxu0 %v415
    %v479 = vpop.f32.mrf.mxu0
    %v480 = vadd.f32 0.0, %v479
    %481 = vdwg.mxu0
    %v482 = vmul.f32 %v435, %v119
    %v483 = vmul.f32 %v438, %v120
    %v484 = vmul.f32 %v441, %v121
    %v485 = vmul.f32 %v444, %v122
    %v486 = vmul.f32 %v447, %v123
    %v487 = vmul.f32 %v450, %v124
    %v488 = vmul.f32 %v453, %v125
    %v489 = vmul.f32 %v456, %v126
    %v490 = vmul.f32 %v459, %v127
    %v491 = vmul.f32 %v462, %v128
    %v492 = vmul.f32 %v465, %v129
    %v493 = vmul.f32 %v468, %v130
    %v494 = vmul.f32 %v471, %v131
    %v495 = vmul.f32 %v474, %v132
    %v496 = vmul.f32 %v477, %v133
    %v497 = vmul.f32 %v480, %v134
    %v498 = vsel %vm236, %v356, 0
    %v500 = vsel %vm236, %v359, 0
    %v503 = vsel %vm236, %v482, 0
    %v506 = vsel %vm236, %v483, 0
    %v509 = vsel %vm236, %v484, 0
    %v512 = vsel %vm236, %v485, 0
    %v515 = vsel %vm236, %v486, 0
    %v518 = vsel %vm236, %v487, 0
    %v521 = vsel %vm236, %v488, 0
    %v524 = vsel %vm236, %v489, 0
    %v527 = vsel %vm236, %v490, 0
    %v530 = vsel %vm236, %v491, 0
    %v533 = vsel %vm236, %v492, 0
    %v536 = vsel %vm236, %v493, 0
    %v539 = vsel %vm236, %v494, 0
    %v542 = vsel %vm236, %v495, 0
    %v545 = vsel %vm236, %v496, 0
    %v548 = vsel %vm236, %v497, 0
    %550 = vmatpush.xpose.msra.mxu0 %v548
    %551 = vmatpush.xpose.msra.mxu0 %v545
    %552 = vmatpush.xpose.msra.mxu0 %v542
    %553 = vmatpush.xpose.msra.mxu0 %v539
    %554 = vmatpush.xpose.msra.mxu0 %v536
    %555 = vmatpush.xpose.msra.mxu0 %v533
    %556 = vmatpush.xpose.msra.mxu0 %v530
    %557 = vmatpush.xpose.msra.mxu0 %v527
    %558 = vmatpush.xpose.msra.mxu0 %v524
    %559 = vmatpush.xpose.msra.mxu0 %v521
    %560 = vmatpush.xpose.msra.mxu0 %v518
    %561 = vmatpush.xpose.msra.mxu0 %v515
    %562 = vmatpush.xpose.msra.mxu0 %v512
    %563 = vmatpush.xpose.msra.mxu0 %v509
    %564 = vmatpush.xpose.msra.mxu0 %v506
    %565 = vmatpush.xpose.msra.mxu0 %v503
    %566 = vmatmul.f32.gmra.mxu0 %v498
    %v567 = vpop.f32.mrf.mxu0
    %v568 = vadd.f32 0.0, %v567
    %569 = vmatmul.f32.gmra.mxu0 %v500
    %v570 = vpop.f32.mrf.mxu0
    %v571 = vadd.f32 0.0, %v570
    %572 = vdwg.mxu0
    %573 = vmax.xlane.f32.xlu0 %v568
    %v574 = vpop.xlane.xlu0 %573
    %575 = vmax.xlane.f32.xlu0 %v571
    %v576 = vpop.xlane.xlu0 %575
    %v577 = vsub.f32 %v568, %v574
    %v578 = vsub.f32 %v571, %v576
    %v579 = vmul.f32 %v577, 1.442695
    %v580 = vpow.pop %v579
    %v581 = vmul.f32 %v578, 1.442695
    %v582 = vpow.pop %v581
    %583 = vmatpush.msra.mxu0 %v188
    %584 = vmatpush.msra.mxu0 %v187
    %585 = vmatpush.msra.mxu0 %v186
    %586 = vmatpush.msra.mxu0 %v185
    %587 = vmatpush.msra.mxu0 %v184
    %588 = vmatpush.msra.mxu0 %v183
    %589 = vmatpush.msra.mxu0 %v182
    %590 = vmatpush.msra.mxu0 %v181
    %591 = vmatpush.msra.mxu0 %v180
    %592 = vmatpush.msra.mxu0 %v179
    %593 = vmatpush.msra.mxu0 %v178
    %594 = vmatpush.msra.mxu0 %v177
    %595 = vmatpush.msra.mxu0 %v176
    %596 = vmatpush.msra.mxu0 %v175
    %597 = vmatpush.msra.mxu0 %v174
    %598 = vmatpush.msra.mxu0 %v173
    %599 = vmatmul.f32.gmra.mxu0 %v580
    %v600 = vpop.f32.mrf.mxu0
    %v601 = vadd.f32 0.0, %v600
    %602 = vmatmul.f32.gmra.mxu0 %v582
    %v603 = vpop.f32.mrf.mxu0
    %v604 = vadd.f32 0.0, %v603
    %605 = vdwg.mxu0
    %v606 = vmul.f32 %v580, %v141
    %v607 = vmul.f32 %v582, %v142
    %v608 = vrcp.pop %v601
    %v609 = vmul.f32 %v601, %v608
    %v610 = vsub.f32 1.0, %v609
    %v611 = vmul.f32 %v608, %v610
    %v612 = vadd.f32 %v608, %v611
    %vm613 = vweird.f32 %v601
    %vm614 = vweird.f32 %v608
    %vm615 = vmor %vm613, %vm614
    %v616 = vsel %vm615, %v608, %v612
    %v617 = vand.u32 2147483647, %v601
    %vm618 = vcmp.eq.f32.partialorder %v617, 8.507059e+37
    %v619 = vand.u32 %v601, 2147483648
    %v620 = vor.u32 1.1754944e-38, %v619
    %v621 = vsel %vm618, %v620, %v616
    %v622 = vmul.f32 %v606, %v621
    %v623 = vrcp.pop %v604
    %v624 = vmul.f32 %v604, %v623
    %v625 = vsub.f32 1.0, %v624
    %v626 = vmul.f32 %v623, %v625
    %v627 = vadd.f32 %v623, %v626
    %vm628 = vweird.f32 %v604
    %vm629 = vweird.f32 %v623
    %vm630 = vmor %vm628, %vm629
    %v631 = vsel %vm630, %v623, %v627
    %v632 = vand.u32 2147483647, %v604
    %vm633 = vcmp.eq.f32.partialorder %v632, 8.507059e+37
    %v634 = vand.u32 %v604, 2147483648
    %v635 = vor.u32 1.1754944e-38, %v634
    %v636 = vsel %vm633, %v635, %v631
    %v637 = vmul.f32 %v607, %v636
    %638 = vrot.lane.b32.xlu0 %v482, 96
    %v639 = vpop.permute.xlu0 %638
    %640 = vrot.lane.b32.xlu0 %v483, 96
    %v641 = vpop.permute.xlu0 %640
    %642 = vrot.lane.b32.xlu0 %v484, 96
    %v643 = vpop.permute.xlu0 %642
    %644 = vrot.lane.b32.xlu0 %v485, 96
    %v645 = vpop.permute.xlu0 %644
    %646 = vrot.lane.b32.xlu0 %v486, 96
    %v647 = vpop.permute.xlu0 %646
    %648 = vrot.lane.b32.xlu0 %v487, 96
    %v649 = vpop.permute.xlu0 %648
    %650 = vrot.lane.b32.xlu0 %v488, 96
    %v651 = vpop.permute.xlu0 %650
    %652 = vrot.lane.b32.xlu0 %v489, 96
    %v653 = vpop.permute.xlu0 %652
    %654 = vrot.lane.b32.xlu0 %v490, 96
    %v655 = vpop.permute.xlu0 %654
    %656 = vrot.lane.b32.xlu0 %v491, 96
    %v657 = vpop.permute.xlu0 %656
    %658 = vrot.lane.b32.xlu0 %v492, 96
    %v659 = vpop.permute.xlu0 %658
    %660 = vrot.lane.b32.xlu0 %v493, 96
    %v661 = vpop.permute.xlu0 %660
    %662 = vrot.lane.b32.xlu0 %v494, 96
    %v663 = vpop.permute.xlu0 %662
    %664 = vrot.lane.b32.xlu0 %v495, 96
    %v665 = vpop.permute.xlu0 %664
    %666 = vrot.lane.b32.xlu0 %v496, 96
    %v667 = vpop.permute.xlu0 %666
    %668 = vrot.lane.b32.xlu0 %v497, 96
    %v669 = vpop.permute.xlu0 %668
    %686 = vmatpush.msra.mxu0 %v669
    %687 = vmatpush.msra.mxu0 %v667
    %688 = vmatpush.msra.mxu0 %v665
    %689 = vmatpush.msra.mxu0 %v663
    %690 = vmatpush.msra.mxu0 %v661
    %691 = vmatpush.msra.mxu0 %v659
    %692 = vmatpush.msra.mxu0 %v657
    %693 = vmatpush.msra.mxu0 %v655
    %694 = vmatpush.msra.mxu0 %v653
    %695 = vmatpush.msra.mxu0 %v651
    %696 = vmatpush.msra.mxu0 %v649
    %697 = vmatpush.msra.mxu0 %v647
    %698 = vmatpush.msra.mxu0 %v645
    %699 = vmatpush.msra.mxu0 %v643
    %700 = vmatpush.msra.mxu0 %v641
    %701 = vmatpush.msra.mxu0 %v639
    %702 = vmatmul.f32.gmra.mxu0 %v622
    %v703 = vpop.f32.mrf.mxu0
    %v704 = vadd.f32 0.0, %v703
    %705 = vmatmul.f32.gmra.mxu0 %v637
    %v706 = vpop.f32.mrf.mxu0
    %v707 = vadd.f32 0.0, %v706
    %708 = vdwg.mxu0
    %v709 = vperm.slane %v325, 0
    %714 = vrot.lane.b32.xlu0 %v299, 32
    %v715 = vpop.permute.xlu0 %714
    %716 = vrot.lane.b32.xlu0 %v300, 32
    %v717 = vpop.permute.xlu0 %716
    %718 = vrot.lane.b32.xlu0 %v301, 32
    %v719 = vpop.permute.xlu0 %718
    %720 = vrot.lane.b32.xlu0 %v302, 32
    %v721 = vpop.permute.xlu0 %720
    %v727 = vsel %vm236, %v704, 0
    %v730 = vsel %vm236, %v707, 0
    %732 = vmatpush.msra.mxu0 0.0
    %733 = vmatpush.msra.mxu0 0.0
    %734 = vmatpush.msra.mxu0 0.0
    %735 = vmatpush.msra.mxu0 0.0
    %736 = vmatpush.msra.mxu0 0.0
    %737 = vmatpush.msra.mxu0 0.0
    %738 = vmatpush.msra.mxu0 0.0
    %739 = vmatpush.msra.mxu0 0.0
    %740 = vmatpush.msra.mxu0 0.0
    %741 = vmatpush.msra.mxu0 0.0
    %742 = vmatpush.msra.mxu0 0.0
    %743 = vmatpush.msra.mxu0 0.0
    %744 = vmatpush.msra.mxu0 %v721
    %745 = vmatpush.msra.mxu0 %v719
    %746 = vmatpush.msra.mxu0 %v717
    %747 = vmatpush.msra.mxu0 %v715
    %748 = vmatmul.f32.gmra.mxu0 %v727
    %v749 = vpop.f32.mrf.mxu0
    %v750 = vadd.f32 %v709, %v749
    %751 = vmatmul.f32.gmra.mxu0 %v730
    %v752 = vpop.f32.mrf.mxu0
    %v753 = vadd.f32 %v709, %v752
    %754 = vdwg.mxu0
    %v755 = vadd.f32 %v297, %v750
    %v756 = vadd.f32 %v298, %v753
    %v757 = vsel %vm236, %v755, 0.0
    %758 = vadd.xlane.f32.xlu0 %v757
    %v759 = vpop.xlane.xlu0 %758
    %v760 = vsel %vm236, %v756, 0.0
    %761 = vadd.xlane.f32.xlu0 %v760
    %v762 = vpop.xlane.xlu0 %761
    %v763 = vmul.f32 %v759, %v249
    %v764 = vmul.f32 %v762, %v249
    %v765 = vsub.f32 %v755, %v763
    %v766 = vsub.f32 %v756, %v764
    %v767 = vmul.f32 %v765, %v765
    %v768 = vmul.f32 %v766, %v766
    %v769 = vsel %vm236, %v767, 0.0
    %770 = vadd.xlane.f32.xlu0 %v769
    %v771 = vpop.xlane.xlu0 %770
    %v772 = vsel %vm236, %v768, 0.0
    %773 = vadd.xlane.f32.xlu0 %v772
    %v774 = vpop.xlane.xlu0 %773
    %v775 = vmul.f32 %v771, %v249
    %v776 = vmul.f32 %v774, %v249
    %v777 = vadd.f32 %v775, 1e-05
    %v778 = vadd.f32 %v776, 1e-05
    %v779 = vrsqrt.pop %v777
    %v780 = vmul.f32 %v779, %v777
    %v781 = vmul.f32 %v780, %v779
    %v782 = vmul.f32 0.5, %v781
    %v783 = vsub.f32 1.5, %v782
    %v784 = vmul.f32 %v779, %v783
    %vm785 = vweird.f32 %v777
    %vm786 = vweird.f32 %v779
    %vm787 = vmor %vm785, %vm786
    %v788 = vsel %vm787, %v779, %v784
    %v789 = vrsqrt.pop %v778
    %v790 = vmul.f32 %v789, %v778
    %v791 = vmul.f32 %v790, %v789
    %v792 = vmul.f32 0.5, %v791
    %v793 = vsub.f32 1.5, %v792
    %v794 = vmul.f32 %v789, %v793
    %vm795 = vweird.f32 %v778
    %vm796 = vweird.f32 %v789
    %vm797 = vmor %vm795, %vm796
    %v798 = vsel %vm797, %v789, %v794
    %v799 = vmul.f32 %v765, %v788
    %v800 = vmul.f32 %v766, %v798
    %v801 = vperm.slane %v326, 0
    %v802 = vmul.f32 %v799, %v801
    %v803 = vmul.f32 %v800, %v801
    %v804 = vperm.slane %v327, 0
    %v805 = vadd.f32 %v802, %v804
    %v806 = vadd.f32 %v803, %v804
    %v807 = vperm.slane %v324, 0
    %v809 = vsel %vm236, %v805, 0
    %v812 = vsel %vm236, %v806, 0
    %814 = vmatpush.msra.mxu0 0.0
    %815 = vmatpush.msra.mxu0 0.0
    %816 = vmatpush.msra.mxu0 0.0
    %817 = vmatpush.msra.mxu0 0.0
    %818 = vmatpush.msra.mxu0 0.0
    %819 = vmatpush.msra.mxu0 0.0
    %820 = vmatpush.msra.mxu0 0.0
    %821 = vmatpush.msra.mxu0 0.0
    %822 = vmatpush.msra.mxu0 0.0
    %823 = vmatpush.msra.mxu0 0.0
    %824 = vmatpush.msra.mxu0 0.0
    %825 = vmatpush.msra.mxu0 0.0
    %826 = vmatpush.msra.mxu0 %v306
    %827 = vmatpush.msra.mxu0 %v305
    %828 = vmatpush.msra.mxu0 %v304
    %829 = vmatpush.msra.mxu0 %v303
    %830 = vmatmul.f32.gmra.mxu0 %v809
    %v831 = vpop.f32.mrf.mxu0
    %v832 = vadd.f32 %v807, %v831
    %833 = vmatmul.f32.gmra.mxu0 %v812
    %v834 = vpop.f32.mrf.mxu0
    %v835 = vadd.f32 %v807, %v834
    %836 = vdwg.mxu0
    %v837 = vmax.f32 %v832, 0.0
    %v838 = vmax.f32 %v835, 0.0
    %v839 = vperm.slane %v330, 0
    %840 = vmatpush.msra.mxu0 %v322
    %841 = vmatpush.msra.mxu0 %v321
    %842 = vmatpush.msra.mxu0 %v320
    %843 = vmatpush.msra.mxu0 %v319
    %844 = vmatpush.msra.mxu0 %v318
    %845 = vmatpush.msra.mxu0 %v317
    %846 = vmatpush.msra.mxu0 %v316
    %847 = vmatpush.msra.mxu0 %v315
    %848 = vmatpush.msra.mxu0 %v314
    %849 = vmatpush.msra.mxu0 %v313
    %850 = vmatpush.msra.mxu0 %v312
    %851 = vmatpush.msra.mxu0 %v311
    %852 = vmatpush.msra.mxu0 %v310
    %853 = vmatpush.msra.mxu0 %v309
    %854 = vmatpush.msra.mxu0 %v308
    %855 = vmatpush.msra.mxu0 %v307
    %856 = vmatmul.f32.gmra.mxu0 %v837
    %v857 = vpop.f32.mrf.mxu0
    %v858 = vadd.f32 %v839, %v857
    %859 = vmatmul.f32.gmra.mxu0 %v838
    %v860 = vpop.f32.mrf.mxu0
    %v861 = vadd.f32 %v839, %v860
    %862 = vdwg.mxu0
    %v863 = vadd.f32 %v805, %v858
    %v864 = vadd.f32 %v806, %v861
    %v865 = vsel %vm236, %v863, 0.0
    %866 = vadd.xlane.f32.xlu0 %v865
    %v867 = vpop.xlane.xlu0 %866
    %v868 = vsel %vm236, %v864, 0.0
    %869 = vadd.xlane.f32.xlu0 %v868
    %v870 = vpop.xlane.xlu0 %869
    %v871 = vmul.f32 %v867, %v249
    %v872 = vmul.f32 %v870, %v249
    %v873 = vsub.f32 %v863, %v871
    %v874 = vsub.f32 %v864, %v872
    %v875 = vmul.f32 %v873, %v873
    %v876 = vmul.f32 %v874, %v874
    %v877 = vsel %vm236, %v875, 0.0
    %878 = vadd.xlane.f32.xlu0 %v877
    %v879 = vpop.xlane.xlu0 %878
    %v880 = vsel %vm236, %v876, 0.0
    %881 = vadd.xlane.f32.xlu0 %v880
    %v882 = vpop.xlane.xlu0 %881
    %v883 = vmul.f32 %v879, %v249
    %v884 = vmul.f32 %v882, %v249
    %v885 = vadd.f32 %v883, 1e-05
    %v886 = vadd.f32 %v884, 1e-05
    %v887 = vrsqrt.pop %v885
    %v888 = vmul.f32 %v887, %v885
    %v889 = vmul.f32 %v888, %v887
    %v890 = vmul.f32 0.5, %v889
    %v891 = vsub.f32 1.5, %v890
    %v892 = vmul.f32 %v887, %v891
    %vm893 = vweird.f32 %v885
    %vm894 = vweird.f32 %v887
    %vm895 = vmor %vm893, %vm894
    %v896 = vsel %vm895, %v887, %v892
    %v897 = vrsqrt.pop %v886
    %v898 = vmul.f32 %v897, %v886
    %v899 = vmul.f32 %v898, %v897
    %v900 = vmul.f32 0.5, %v899
    %v901 = vsub.f32 1.5, %v900
    %v902 = vmul.f32 %v897, %v901
    %vm903 = vweird.f32 %v886
    %vm904 = vweird.f32 %v897
    %vm905 = vmor %vm903, %vm904
    %v906 = vsel %vm905, %v897, %v902
    %v907 = vmul.f32 %v873, %v896
    %v908 = vmul.f32 %v874, %v906
    %v909 = vperm.slane %v328, 0
    %v910 = vmul.f32 %v907, %v909
    %v911 = vmul.f32 %v908, %v909
    %v912 = vperm.slane %v329, 0
    %v913 = vadd.f32 %v910, %v912
    %v914 = vadd.f32 %v911, %v912
    %s915 = scalar_lea.vmem %s2, 72
    %v916 = vld [vmem:[%s915] sm:$0xff]
    %v917 = vld [vmem:[%s915 + $0x8] sm:$0xff]
    %v918 = vld [vmem:[%s915 + $0x10] sm:$0xff]
    %v919 = vld [vmem:[%s915 + $0x18] sm:$0xff]
    %v920 = vld [vmem:[%s915 + $0x20] sm:$0xff]
    %v921 = vld [vmem:[%s915 + $0x28] sm:$0xff]
    %v922 = vld [vmem:[%s915 + $0x30] sm:$0xff]
    %v923 = vld [vmem:[%s915 + $0x38] sm:$0xff]
    %s924 = scalar_lea.vmem %s3, 128
    %v925 = vld [vmem:[%s924] sm:$0xff]
    %v926 = vld [vmem:[%s924 + $0x8] sm:$0xff]
    %v927 = vld [vmem:[%s924 + $0x10] sm:$0xff]
    %v928 = vld [vmem:[%s924 + $0x18] sm:$0xff]
    %v929 = vld [vmem:[%s924 + $0x20] sm:$0xff]
    %v930 = vld [vmem:[%s924 + $0x28] sm:$0xff]
    %v931 = vld [vmem:[%s924 + $0x30] sm:$0xff]
    %v932 = vld [vmem:[%s924 + $0x38] sm:$0xff]
    %v933 = vld [vmem:[%s924 + $0x40] sm:$0xff]
    %v934 = vld [vmem:[%s924 + $0x48] sm:$0xff]
    %v935 = vld [vmem:[%s924 + $0x50] sm:$0xff]
    %v936 = vld [vmem:[%s924 + $0x58] sm:$0xff]
    %v937 = vld [vmem:[%s924 + $0x60] sm:$0xff]
    %v938 = vld [vmem:[%s924 + $0x68] sm:$0xff]
    %v939 = vld [vmem:[%s924 + $0x70] sm:$0xff]
    %v940 = vld [vmem:[%s924 + $0x78] sm:$0xff]
    %v941 = vld [vmem:[%s915 + $0x40] sm:$0x1]
    %v942 = vld [vmem:[%s915 + $0x41] sm:$0x1]
    %v943 = vld [vmem:[%s915 + $0x42] sm:$0x1]
    %v944 = vld [vmem:[%s915 + $0x43] sm:$0x1]
    %v945 = vld [vmem:[%s915 + $0x44] sm:$0x1]
    %v946 = vld [vmem:[%s915 + $0x45] sm:$0x1]
    %v947 = vld [vmem:[%s915 + $0x46] sm:$0x1]
    %v948 = vld [vmem:[%s915 + $0x47] sm:$0x1]
    %v949 = vperm.slane %v941, 0
    %v951 = vsel %vm236, %v913, 0
    %v954 = vsel %vm236, %v914, 0
    %956 = vmatpush.msra.mxu0 0.0
    %957 = vmatpush.msra.mxu0 0.0
    %958 = vmatpush.msra.mxu0 0.0
    %959 = vmatpush.msra.mxu0 0.0
    %960 = vmatpush.msra.mxu0 0.0
    %961 = vmatpush.msra.mxu0 0.0
    %962 = vmatpush.msra.mxu0 0.0
    %963 = vmatpush.msra.mxu0 0.0
    %964 = vmatpush.msra.mxu0 0.0
    %965 = vmatpush.msra.mxu0 0.0
    %966 = vmatpush.msra.mxu0 0.0
    %967 = vmatpush.msra.mxu0 0.0
    %968 = vmatpush.msra.mxu0 %v919
    %969 = vmatpush.msra.mxu0 %v918
    %970 = vmatpush.msra.mxu0 %v917
    %971 = vmatpush.msra.mxu0 %v916
    %972 = vmatmul.f32.gmra.mxu0 %v951
    %v973 = vpop.f32.mrf.mxu0
    %v974 = vadd.f32 %v949, %v973
    %975 = vmatmul.f32.gmra.mxu0 %v954
    %v976 = vpop.f32.mrf.mxu0
    %v977 = vadd.f32 %v949, %v976
    %978 = vdwg.mxu0
    %981 = vrot.lane.b32.xlu0 %v974, 96
    %v982 = vpop.permute.xlu0 %981
    %983 = vrot.lane.b32.xlu0 %v977, 96
    %v984 = vpop.permute.xlu0 %983
    %987 = vmatpush.msra.mxu0 0.0
    %988 = vmatpush.msra.mxu0 0.0
    %989 = vmatpush.msra.mxu0 0.0
    %990 = vmatpush.msra.mxu0 0.0
    %991 = vmatpush.msra.mxu0 0.0
    %992 = vmatpush.msra.mxu0 0.0
    %993 = vmatpush.msra.mxu0 0.0
    %994 = vmatpush.msra.mxu0 0.0
    %995 = vmatpush.msra.mxu0 0.0
    %996 = vmatpush.msra.mxu0 0.0
    %997 = vmatpush.msra.mxu0 0.0
    %998 = vmatpush.msra.mxu0 0.0
    %999 = vmatpush.msra.mxu0 0.0
    %1000 = vmatpush.msra.mxu0 0.0
    %1001 = vmatpush.msra.mxu0 %v984
    %1002 = vmatpush.msra.mxu0 %v982
    %1003 = vmatmul.f32.gmra.mxu0 %v370
    %v1004 = vpop.f32.mrf.mxu0
    %v1005 = vadd.f32 0.0, %v1004
    %1006 = vmatmul.f32.gmra.mxu0 %v373
    %v1007 = vpop.f32.mrf.mxu0
    %v1008 = vadd.f32 0.0, %v1007
    %1009 = vmatmul.f32.gmra.mxu0 %v376
    %v1010 = vpop.f32.mrf.mxu0
    %v1011 = vadd.f32 0.0, %v1010
    %1012 = vmatmul.f32.gmra.mxu0 %v379
    %v1013 = vpop.f32.mrf.mxu0
    %v1014 = vadd.f32 0.0, %v1013
    %1015 = vmatmul.f32.gmra.mxu0 %v382
    %v1016 = vpop.f32.mrf.mxu0
    %v1017 = vadd.f32 0.0, %v1016
    %1018 = vmatmul.f32.gmra.mxu0 %v385
    %v1019 = vpop.f32.mrf.mxu0
    %v1020 = vadd.f32 0.0, %v1019
    %1021 = vmatmul.f32.gmra.mxu0 %v388
    %v1022 = vpop.f32.mrf.mxu0
    %v1023 = vadd.f32 0.0, %v1022
    %1024 = vmatmul.f32.gmra.mxu0 %v391
    %v1025 = vpop.f32.mrf.mxu0
    %v1026 = vadd.f32 0.0, %v1025
    %1027 = vmatmul.f32.gmra.mxu0 %v394
    %v1028 = vpop.f32.mrf.mxu0
    %v1029 = vadd.f32 0.0, %v1028
    %1030 = vmatmul.f32.gmra.mxu0 %v397
    %v1031 = vpop.f32.mrf.mxu0
    %v1032 = vadd.f32 0.0, %v1031
    %1033 = vmatmul.f32.gmra.mxu0 %v400
    %v1034 = vpop.f32.mrf.mxu0
    %v1035 = vadd.f32 0.0, %v1034
    %1036 = vmatmul.f32.gmra.mxu0 %v403
    %v1037 = vpop.f32.mrf.mxu0
    %v1038 = vadd.f32 0.0, %v1037
    %1039 = vmatmul.f32.gmra.mxu0 %v406
    %v1040 = vpop.f32.mrf.mxu0
    %v1041 = vadd.f32 0.0, %v1040
    %1042 = vmatmul.f32.gmra.mxu0 %v409
    %v1043 = vpop.f32.mrf.mxu0
    %v1044 = vadd.f32 0.0, %v1043
    %1045 = vmatmul.f32.gmra.mxu0 %v412
    %v1046 = vpop.f32.mrf.mxu0
    %v1047 = vadd.f32 0.0, %v1046
    %1048 = vmatmul.f32.gmra.mxu0 %v415
    %v1049 = vpop.f32.mrf.mxu0
    %v1050 = vadd.f32 0.0, %v1049
    %1051 = vdwg.mxu0
    %v1052 = vmul.f32 %v1005, %v119
    %v1053 = vmul.f32 %v1008, %v120
    %v1054 = vmul.f32 %v1011, %v121
    %v1055 = vmul.f32 %v1014, %v122
    %v1056 = vmul.f32 %v1017, %v123
    %v1057 = vmul.f32 %v1020, %v124
    %v1058 = vmul.f32 %v1023, %v125
    %v1059 = vmul.f32 %v1026, %v126
    %v1060 = vmul.f32 %v1029, %v127
    %v1061 = vmul.f32 %v1032, %v128
    %v1062 = vmul.f32 %v1035, %v129
    %v1063 = vmul.f32 %v1038, %v130
    %v1064 = vmul.f32 %v1041, %v131
    %v1065 = vmul.f32 %v1044, %v132
    %v1066 = vmul.f32 %v1047, %v133
    %v1067 = vmul.f32 %v1050, %v134
    %v1068 = vsel %vm236, %v974, 0
    %v1070 = vsel %vm236, %v977, 0
    %v1073 = vsel %vm236, %v1052, 0
    %v1076 = vsel %vm236, %v1053, 0
    %v1079 = vsel %vm236, %v1054, 0
    %v1082 = vsel %vm236, %v1055, 0
    %v1085 = vsel %vm236, %v1056, 0
    %v1088 = vsel %vm236, %v1057, 0
    %v1091 = vsel %vm236, %v1058, 0
    %v1094 = vsel %vm236, %v1059, 0
    %v1097 = vsel %vm236, %v1060, 0
    %v1100 = vsel %vm236, %v1061, 0
    %v1103 = vsel %vm236, %v1062, 0
    %v1106 = vsel %vm236, %v1063, 0
    %v1109 = vsel %vm236, %v1064, 0
    %v1112 = vsel %vm236, %v1065, 0
    %v1115 = vsel %vm236, %v1066, 0
    %v1118 = vsel %vm236, %v1067, 0
    %1120 = vmatpush.xpose.msra.mxu0 %v1118
    %1121 = vmatpush.xpose.msra.mxu0 %v1115
    %1122 = vmatpush.xpose.msra.mxu0 %v1112
    %1123 = vmatpush.xpose.msra.mxu0 %v1109
    %1124 = vmatpush.xpose.msra.mxu0 %v1106
    %1125 = vmatpush.xpose.msra.mxu0 %v1103
    %1126 = vmatpush.xpose.msra.mxu0 %v1100
    %1127 = vmatpush.xpose.msra.mxu0 %v1097
    %1128 = vmatpush.xpose.msra.mxu0 %v1094
    %1129 = vmatpush.xpose.msra.mxu0 %v1091
    %1130 = vmatpush.xpose.msra.mxu0 %v1088
    %1131 = vmatpush.xpose.msra.mxu0 %v1085
    %1132 = vmatpush.xpose.msra.mxu0 %v1082
    %1133 = vmatpush.xpose.msra.mxu0 %v1079
    %1134 = vmatpush.xpose.msra.mxu0 %v1076
    %1135 = vmatpush.xpose.msra.mxu0 %v1073
    %1136 = vmatmul.f32.gmra.mxu0 %v1068
    %v1137 = vpop.f32.mrf.mxu0
    %v1138 = vadd.f32 0.0, %v1137
    %1139 = vmatmul.f32.gmra.mxu0 %v1070
    %v1140 = vpop.f32.mrf.mxu0
    %v1141 = vadd.f32 0.0, %v1140
    %1142 = vdwg.mxu0
    %1143 = vmax.xlane.f32.xlu0 %v1138
    %v1144 = vpop.xlane.xlu0 %1143
    %1145 = vmax.xlane.f32.xlu0 %v1141
    %v1146 = vpop.xlane.xlu0 %1145
    %v1147 = vsub.f32 %v1138, %v1144
    %v1148 = vsub.f32 %v1141, %v1146
    %v1149 = vmul.f32 %v1147, 1.442695
    %v1150 = vpow.pop %v1149
    %v1151 = vmul.f32 %v1148, 1.442695
    %v1152 = vpow.pop %v1151
    %1153 = vmatpush.msra.mxu0 %v188
    %1154 = vmatpush.msra.mxu0 %v187
    %1155 = vmatpush.msra.mxu0 %v186
    %1156 = vmatpush.msra.mxu0 %v185
    %1157 = vmatpush.msra.mxu0 %v184
    %1158 = vmatpush.msra.mxu0 %v183
    %1159 = vmatpush.msra.mxu0 %v182
    %1160 = vmatpush.msra.mxu0 %v181
    %1161 = vmatpush.msra.mxu0 %v180
    %1162 = vmatpush.msra.mxu0 %v179
    %1163 = vmatpush.msra.mxu0 %v178
    %1164 = vmatpush.msra.mxu0 %v177
    %1165 = vmatpush.msra.mxu0 %v176
    %1166 = vmatpush.msra.mxu0 %v175
    %1167 = vmatpush.msra.mxu0 %v174
    %1168 = vmatpush.msra.mxu0 %v173
    %1169 = vmatmul.f32.gmra.mxu0 %v1150
    %v1170 = vpop.f32.mrf.mxu0
    %v1171 = vadd.f32 0.0, %v1170
    %1172 = vmatmul.f32.gmra.mxu0 %v1152
    %v1173 = vpop.f32.mrf.mxu0
    %v1174 = vadd.f32 0.0, %v1173
    %1175 = vdwg.mxu0
    %v1176 = vmul.f32 %v1150, %v141
    %v1177 = vmul.f32 %v1152, %v142
    %v1178 = vrcp.pop %v1171
    %v1179 = vmul.f32 %v1171, %v1178
    %v1180 = vsub.f32 1.0, %v1179
    %v1181 = vmul.f32 %v1178, %v1180
    %v1182 = vadd.f32 %v1178, %v1181
    %vm1183 = vweird.f32 %v1171
    %vm1184 = vweird.f32 %v1178
    %vm1185 = vmor %vm1183, %vm1184
    %v1186 = vsel %vm1185, %v1178, %v1182
    %v1187 = vand.u32 2147483647, %v1171
    %vm1188 = vcmp.eq.f32.partialorder %v1187, 8.507059e+37
    %v1189 = vand.u32 %v1171, 2147483648
    %v1190 = vor.u32 1.1754944e-38, %v1189
    %v1191 = vsel %vm1188, %v1190, %v1186
    %v1192 = vmul.f32 %v1176, %v1191
    %v1193 = vrcp.pop %v1174
    %v1194 = vmul.f32 %v1174, %v1193
    %v1195 = vsub.f32 1.0, %v1194
    %v1196 = vmul.f32 %v1193, %v1195
    %v1197 = vadd.f32 %v1193, %v1196
    %vm1198 = vweird.f32 %v1174
    %vm1199 = vweird.f32 %v1193
    %vm1200 = vmor %vm1198, %vm1199
    %v1201 = vsel %vm1200, %v1193, %v1197
    %v1202 = vand.u32 2147483647, %v1174
    %vm1203 = vcmp.eq.f32.partialorder %v1202, 8.507059e+37
    %v1204 = vand.u32 %v1174, 2147483648
    %v1205 = vor.u32 1.1754944e-38, %v1204
    %v1206 = vsel %vm1203, %v1205, %v1201
    %v1207 = vmul.f32 %v1177, %v1206
    %1208 = vrot.lane.b32.xlu0 %v1052, 96
    %v1209 = vpop.permute.xlu0 %1208
    %1210 = vrot.lane.b32.xlu0 %v1053, 96
    %v1211 = vpop.permute.xlu0 %1210
    %1212 = vrot.lane.b32.xlu0 %v1054, 96
    %v1213 = vpop.permute.xlu0 %1212
    %1214 = vrot.lane.b32.xlu0 %v1055, 96
    %v1215 = vpop.permute.xlu0 %1214
    %1216 = vrot.lane.b32.xlu0 %v1056, 96
    %v1217 = vpop.permute.xlu0 %1216
    %1218 = vrot.lane.b32.xlu0 %v1057, 96
    %v1219 = vpop.permute.xlu0 %1218
    %1220 = vrot.lane.b32.xlu0 %v1058, 96
    %v1221 = vpop.permute.xlu0 %1220
    %1222 = vrot.lane.b32.xlu0 %v1059, 96
    %v1223 = vpop.permute.xlu0 %1222
    %1224 = vrot.lane.b32.xlu0 %v1060, 96
    %v1225 = vpop.permute.xlu0 %1224
    %1226 = vrot.lane.b32.xlu0 %v1061, 96
    %v1227 = vpop.permute.xlu0 %1226
    %1228 = vrot.lane.b32.xlu0 %v1062, 96
    %v1229 = vpop.permute.xlu0 %1228
    %1230 = vrot.lane.b32.xlu0 %v1063, 96
    %v1231 = vpop.permute.xlu0 %1230
    %1232 = vrot.lane.b32.xlu0 %v1064, 96
    %v1233 = vpop.permute.xlu0 %1232
    %1234 = vrot.lane.b32.xlu0 %v1065, 96
    %v1235 = vpop.permute.xlu0 %1234
    %1236 = vrot.lane.b32.xlu0 %v1066, 96
    %v1237 = vpop.permute.xlu0 %1236
    %1238 = vrot.lane.b32.xlu0 %v1067, 96
    %v1239 = vpop.permute.xlu0 %1238
    %1256 = vmatpush.msra.mxu0 %v1239
    %1257 = vmatpush.msra.mxu0 %v1237
    %1258 = vmatpush.msra.mxu0 %v1235
    %1259 = vmatpush.msra.mxu0 %v1233
    %1260 = vmatpush.msra.mxu0 %v1231
    %1261 = vmatpush.msra.mxu0 %v1229
    %1262 = vmatpush.msra.mxu0 %v1227
    %1263 = vmatpush.msra.mxu0 %v1225
    %1264 = vmatpush.msra.mxu0 %v1223
    %1265 = vmatpush.msra.mxu0 %v1221
    %1266 = vmatpush.msra.mxu0 %v1219
    %1267 = vmatpush.msra.mxu0 %v1217
    %1268 = vmatpush.msra.mxu0 %v1215
    %1269 = vmatpush.msra.mxu0 %v1213
    %1270 = vmatpush.msra.mxu0 %v1211
    %1271 = vmatpush.msra.mxu0 %v1209
    %1272 = vmatmul.f32.gmra.mxu0 %v1192
    %v1273 = vpop.f32.mrf.mxu0
    %v1274 = vadd.f32 0.0, %v1273
    %1275 = vmatmul.f32.gmra.mxu0 %v1207
    %v1276 = vpop.f32.mrf.mxu0
    %v1277 = vadd.f32 0.0, %v1276
    %1278 = vdwg.mxu0
    %v1279 = vperm.slane %v943, 0
    %1284 = vrot.lane.b32.xlu0 %v916, 32
    %v1285 = vpop.permute.xlu0 %1284
    %1286 = vrot.lane.b32.xlu0 %v917, 32
    %v1287 = vpop.permute.xlu0 %1286
    %1288 = vrot.lane.b32.xlu0 %v918, 32
    %v1289 = vpop.permute.xlu0 %1288
    %1290 = vrot.lane.b32.xlu0 %v919, 32
    %v1291 = vpop.permute.xlu0 %1290
    %v1297 = vsel %vm236, %v1274, 0
    %v1300 = vsel %vm236, %v1277, 0
    %1302 = vmatpush.msra.mxu0 0.0
    %1303 = vmatpush.msra.mxu0 0.0
    %1304 = vmatpush.msra.mxu0 0.0
    %1305 = vmatpush.msra.mxu0 0.0
    %1306 = vmatpush.msra.mxu0 0.0
    %1307 = vmatpush.msra.mxu0 0.0
    %1308 = vmatpush.msra.mxu0 0.0
    %1309 = vmatpush.msra.mxu0 0.0
    %1310 = vmatpush.msra.mxu0 0.0
    %1311 = vmatpush.msra.mxu0 0.0
    %1312 = vmatpush.msra.mxu0 0.0
    %1313 = vmatpush.msra.mxu0 0.0
    %1314 = vmatpush.msra.mxu0 %v1291
    %1315 = vmatpush.msra.mxu0 %v1289
    %1316 = vmatpush.msra.mxu0 %v1287
    %1317 = vmatpush.msra.mxu0 %v1285
    %1318 = vmatmul.f32.gmra.mxu0 %v1297
    %v1319 = vpop.f32.mrf.mxu0
    %v1320 = vadd.f32 %v1279, %v1319
    %1321 = vmatmul.f32.gmra.mxu0 %v1300
    %v1322 = vpop.f32.mrf.mxu0
    %v1323 = vadd.f32 %v1279, %v1322
    %1324 = vdwg.mxu0
    %v1325 = vadd.f32 %v913, %v1320
    %v1326 = vadd.f32 %v914, %v1323
    %v1327 = vsel %vm236, %v1325, 0.0
    %1328 = vadd.xlane.f32.xlu0 %v1327
    %v1329 = vpop.xlane.xlu0 %1328
    %v1330 = vsel %vm236, %v1326, 0.0
    %1331 = vadd.xlane.f32.xlu0 %v1330
    %v1332 = vpop.xlane.xlu0 %1331
    %v1333 = vmul.f32 %v1329, %v249
    %v1334 = vmul.f32 %v1332, %v249
    %v1335 = vsub.f32 %v1325, %v1333
    %v1336 = vsub.f32 %v1326, %v1334
    %v1337 = vmul.f32 %v1335, %v1335
    %v1338 = vmul.f32 %v1336, %v1336
    %v1339 = vsel %vm236, %v1337, 0.0
    %1340 = vadd.xlane.f32.xlu0 %v1339
    %v1341 = vpop.xlane.xlu0 %1340
    %v1342 = vsel %vm236, %v1338, 0.0
    %1343 = vadd.xlane.f32.xlu0 %v1342
    %v1344 = vpop.xlane.xlu0 %1343
    %v1345 = vmul.f32 %v1341, %v249
    %v1346 = vmul.f32 %v1344, %v249
    %v1347 = vadd.f32 %v1345, 1e-05
    %v1348 = vadd.f32 %v1346, 1e-05
    %v1349 = vrsqrt.pop %v1347
    %v1350 = vmul.f32 %v1349, %v1347
    %v1351 = vmul.f32 %v1350, %v1349
    %v1352 = vmul.f32 0.5, %v1351
    %v1353 = vsub.f32 1.5, %v1352
    %v1354 = vmul.f32 %v1349, %v1353
    %vm1355 = vweird.f32 %v1347
    %vm1356 = vweird.f32 %v1349
    %vm1357 = vmor %vm1355, %vm1356
    %v1358 = vsel %vm1357, %v1349, %v1354
    %v1359 = vrsqrt.pop %v1348
    %v1360 = vmul.f32 %v1359, %v1348
    %v1361 = vmul.f32 %v1360, %v1359
    %v1362 = vmul.f32 0.5, %v1361
    %v1363 = vsub.f32 1.5, %v1362
    %v1364 = vmul.f32 %v1359, %v1363
    %vm1365 = vweird.f32 %v1348
    %vm1366 = vweird.f32 %v1359
    %vm1367 = vmor %vm1365, %vm1366
    %v1368 = vsel %vm1367, %v1359, %v1364
    %v1369 = vmul.f32 %v1335, %v1358
    %v1370 = vmul.f32 %v1336, %v1368
    %v1371 = vperm.slane %v944, 0
    %v1372 = vmul.f32 %v1369, %v1371
    %v1373 = vmul.f32 %v1370, %v1371
    %v1374 = vperm.slane %v945, 0
    %v1375 = vadd.f32 %v1372, %v1374
    %v1376 = vadd.f32 %v1373, %v1374
    %v1377 = vperm.slane %v942, 0
    %v1379 = vsel %vm236, %v1375, 0
    %v1382 = vsel %vm236, %v1376, 0
    %1384 = vmatpush.msra.mxu0 0.0
    %1385 = vmatpush.msra.mxu0 0.0
    %1386 = vmatpush.msra.mxu0 0.0
    %1387 = vmatpush.msra.mxu0 0.0
    %1388 = vmatpush.msra.mxu0 0.0
    %1389 = vmatpush.msra.mxu0 0.0
    %1390 = vmatpush.msra.mxu0 0.0
    %1391 = vmatpush.msra.mxu0 0.0
    %1392 = vmatpush.msra.mxu0 0.0
    %1393 = vmatpush.msra.mxu0 0.0
    %1394 = vmatpush.msra.mxu0 0.0
    %1395 = vmatpush.msra.mxu0 0.0
    %1396 = vmatpush.msra.mxu0 %v923
    %1397 = vmatpush.msra.mxu0 %v922
    %1398 = vmatpush.msra.mxu0 %v921
    %1399 = vmatpush.msra.mxu0 %v920
    %1400 = vmatmul.f32.gmra.mxu0 %v1379
    %v1401 = vpop.f32.mrf.mxu0
    %v1402 = vadd.f32 %v1377, %v1401
    %1403 = vmatmul.f32.gmra.mxu0 %v1382
    %v1404 = vpop.f32.mrf.mxu0
    %v1405 = vadd.f32 %v1377, %v1404
    %1406 = vdwg.mxu0
    %v1407 = vmax.f32 %v1402, 0.0
    %v1408 = vmax.f32 %v1405, 0.0
    %v1409 = vperm.slane %v948, 0
    %1410 = vmatpush.msra.mxu0 %v940
    %1411 = vmatpush.msra.mxu0 %v939
    %1412 = vmatpush.msra.mxu0 %v938
    %1413 = vmatpush.msra.mxu0 %v937
    %1414 = vmatpush.msra.mxu0 %v936
    %1415 = vmatpush.msra.mxu0 %v935
    %1416 = vmatpush.msra.mxu0 %v934
    %1417 = vmatpush.msra.mxu0 %v933
    %1418 = vmatpush.msra.mxu0 %v932
    %1419 = vmatpush.msra.mxu0 %v931
    %1420 = vmatpush.msra.mxu0 %v930
    %1421 = vmatpush.msra.mxu0 %v929
    %1422 = vmatpush.msra.mxu0 %v928
    %1423 = vmatpush.msra.mxu0 %v927
    %1424 = vmatpush.msra.mxu0 %v926
    %1425 = vmatpush.msra.mxu0 %v925
    %1426 = vmatmul.f32.gmra.mxu0 %v1407
    %v1427 = vpop.f32.mrf.mxu0
    %v1428 = vadd.f32 %v1409, %v1427
    %1429 = vmatmul.f32.gmra.mxu0 %v1408
    %v1430 = vpop.f32.mrf.mxu0
    %v1431 = vadd.f32 %v1409, %v1430
    %1432 = vdwg.mxu0
    %v1433 = vadd.f32 %v1375, %v1428
    %v1434 = vadd.f32 %v1376, %v1431
    %v1435 = vsel %vm236, %v1433, 0.0
    %1436 = vadd.xlane.f32.xlu0 %v1435
    %v1437 = vpop.xlane.xlu0 %1436
    %v1438 = vsel %vm236, %v1434, 0.0
    %1439 = vadd.xlane.f32.xlu0 %v1438
    %v1440 = vpop.xlane.xlu0 %1439
    %v1441 = vmul.f32 %v1437, %v249
    %v1442 = vmul.f32 %v1440, %v249
    %v1443 = vsub.f32 %v1433, %v1441
    %v1444 = vsub.f32 %v1434, %v1442
    %v1445 = vmul.f32 %v1443, %v1443
    %v1446 = vmul.f32 %v1444, %v1444
    %v1447 = vsel %vm236, %v1445, 0.0
    %1448 = vadd.xlane.f32.xlu0 %v1447
    %v1449 = vpop.xlane.xlu0 %1448
    %v1450 = vsel %vm236, %v1446, 0.0
    %1451 = vadd.xlane.f32.xlu0 %v1450
    %v1452 = vpop.xlane.xlu0 %1451
    %v1453 = vmul.f32 %v1449, %v249
    %v1454 = vmul.f32 %v1452, %v249
    %v1455 = vadd.f32 %v1453, 1e-05
    %v1456 = vadd.f32 %v1454, 1e-05
    %v1457 = vrsqrt.pop %v1455
    %v1458 = vmul.f32 %v1457, %v1455
    %v1459 = vmul.f32 %v1458, %v1457
    %v1460 = vmul.f32 0.5, %v1459
    %v1461 = vsub.f32 1.5, %v1460
    %v1462 = vmul.f32 %v1457, %v1461
    %vm1463 = vweird.f32 %v1455
    %vm1464 = vweird.f32 %v1457
    %vm1465 = vmor %vm1463, %vm1464
    %v1466 = vsel %vm1465, %v1457, %v1462
    %v1467 = vrsqrt.pop %v1456
    %v1468 = vmul.f32 %v1467, %v1456
    %v1469 = vmul.f32 %v1468, %v1467
    %v1470 = vmul.f32 0.5, %v1469
    %v1471 = vsub.f32 1.5, %v1470
    %v1472 = vmul.f32 %v1467, %v1471
    %vm1473 = vweird.f32 %v1456
    %vm1474 = vweird.f32 %v1467
    %vm1475 = vmor %vm1473, %vm1474
    %v1476 = vsel %vm1475, %v1467, %v1472
    %v1477 = vmul.f32 %v1443, %v1466
    %v1478 = vmul.f32 %v1444, %v1476
    %v1479 = vperm.slane %v946, 0
    %v1480 = vmul.f32 %v1477, %v1479
    %v1481 = vmul.f32 %v1478, %v1479
    %v1482 = vperm.slane %v947, 0
    %v1483 = vadd.f32 %v1480, %v1482
    %v1484 = vadd.f32 %v1481, %v1482
    %v1486 = vsel %vm204, %v190, 0
    %1488 = vmatpush.msra.mxu0 0.0
    %1489 = vmatpush.msra.mxu0 0.0
    %1490 = vmatpush.msra.mxu0 0.0
    %1491 = vmatpush.msra.mxu0 0.0
    %1492 = vmatpush.msra.mxu0 0.0
    %1493 = vmatpush.msra.mxu0 0.0
    %1494 = vmatpush.msra.mxu0 0.0
    %1495 = vmatpush.msra.mxu0 0.0
    %1496 = vmatpush.msra.mxu0 0.0
    %1497 = vmatpush.msra.mxu0 0.0
    %1498 = vmatpush.msra.mxu0 0.0
    %1499 = vmatpush.msra.mxu0 0.0
    %1500 = vmatpush.msra.mxu0 0.0
    %1501 = vmatpush.msra.mxu0 0.0
    %1502 = vmatpush.msra.mxu0 %v1484
    %1503 = vmatpush.msra.mxu0 %v1483
    %1504 = vmatmul.f32.gmra.mxu0 %v1486
    %v1505 = vpop.f32.mrf.mxu0
    %v1506 = vadd.f32 0.0, %v1505
    %1507 = vdwg.mxu0
    %v1508 = vperm.slane %v200, 0
    %v1510 = vsel %vm236, %v1506, 0
    %1512 = vmatpush.msra.mxu0 0.0
    %1513 = vmatpush.msra.mxu0 0.0
    %1514 = vmatpush.msra.mxu0 0.0
    %1515 = vmatpush.msra.mxu0 0.0
    %1516 = vmatpush.msra.mxu0 0.0
    %1517 = vmatpush.msra.mxu0 0.0
    %1518 = vmatpush.msra.mxu0 0.0
    %1519 = vmatpush.msra.mxu0 0.0
    %1520 = vmatpush.msra.mxu0 0.0
    %1521 = vmatpush.msra.mxu0 0.0
    %1522 = vmatpush.msra.mxu0 0.0
    %1523 = vmatpush.msra.mxu0 0.0
    %1524 = vmatpush.msra.mxu0 %v198
    %1525 = vmatpush.msra.mxu0 %v197
    %1526 = vmatpush.msra.mxu0 %v196
    %1527 = vmatpush.msra.mxu0 %v195
    %1528 = vmatmul.f32.gmra.mxu0 %v1510
    %v1529 = vpop.f32.mrf.mxu0
    %v1530 = vadd.f32 %v1508, %v1529
    %1531 = vdwg.mxu0
    %1532 = vst [vmem:[#allocation2] sm:$0x3] %v1530
    // Predicated region
    $region18: #{tpu_custom_call.1} parent=1 // pred_check
      _
    $region19: #{tpu_custom_call.1} parent=1 // pred_check_branch
      %1534 = sbr.rel (0) target = $region21
    $region20: #{tpu_custom_call.1} parent=1 // pred_region
      %1536 = vsyncadd [#allocation3], 0
      %s1538 = sshll.u32 [#allocation2], 4
      %s1539 = int_to_ptr.vmem [resolvable:$true] %s1538
      %s1540 = sshll.u32 %s4, 4
      %s1541 = int_to_ptr.hbm [resolvable:$true] %s1540
      %1543 = dma.vmem_to_hbm [thread:$0]  %s1539, 32, %s1541, [#allocation3]
    $region21: #{tpu_custom_call.1} parent=1 // pred_fallthru
      _
    // Predicated region
    $region22: #{tpu_custom_call.1} parent=1 // pred_check
      _
    $region23: #{tpu_custom_call.1} parent=1 // pred_check_branch
      %1545 = sbr.rel (0) target = $region25
    $region24: #{tpu_custom_call.1} parent=1 // pred_region
      %1547 = dma.done [#allocation3], 32
    $region25: #{tpu_custom_call.1} parent=1 // pred_fallthru
      _
    %1548 = vsyncpa [#allocation3], 1

</llo_original>
